<compile_context>
chip_gen: v5e
topology: v5e:2x2
jax: 0.10.0
libtpu: 0.0.40
codegen_flags: <defaults>
</compile_context>

<pallas_src>
import math

import jax
import jax.numpy as jnp
from jax import lax
from jax.experimental import pallas as pl
from jax.experimental.pallas import tpu as pltpu

# ----- model dims (small, synthetic) -----
S = 8          # sequence length (number of patches)
D = 32         # d_model
H = 4          # heads
DH = D // H    # head dim
D_FF = 64      # FFN hidden
N_LAYERS = 2
EPS = 1e-5
VEC_W = 128    # lane width of the packed bias/LN slab
OUT_W = 128    # lane width of the packed output slab
SCALE = 1.0 / math.sqrt(DH)

_ATTN_LANES = N_LAYERS * H * S                  # lanes used by attention rows
assert _ATTN_LANES + D <= OUT_W, "output slab too narrow for this config"


def _layernorm(x, gamma, beta):
    mean = jnp.mean(x, axis=-1, keepdims=True)
    var = jnp.mean((x - mean) ** 2, axis=-1, keepdims=True)
    return (x - mean) * jax.lax.rsqrt(var + EPS) * gamma + beta


# ---------------------------------------------------------------------------
# Fused Pallas kernel: all encoder layers + final LayerNorm for one batch elem
# ---------------------------------------------------------------------------
def encoder_kernel(x_ref, wqkv_ref, wo_ref, w1_ref, w2_ref, vec_ref, fnorm_ref,
                   out_ref):
    x = x_ref[0]                                              # (S, D)
    attn_rows = []                                            # per-layer (S, H*S)

    for l in range(N_LAYERS):                                 # static unroll
        vec = vec_ref[l]                                      # (8, VEC_W)
        bqkv = vec[0:1, :3 * D]
        bo = vec[1:2, :D]
        b1 = vec[2:3, :D_FF]
        b2 = vec[3:4, :D]
        g1 = vec[4:5, :D]
        be1 = vec[5:6, :D]
        g2 = vec[6:7, :D]
        be2 = vec[7:8, :D]

        # fused QKV projection: one (S,D) x (D,3D) matmul
        qkv = jnp.dot(x, wqkv_ref[l], preferred_element_type=jnp.float32) + bqkv
        q = qkv[:, 0 * D:1 * D]
        k = qkv[:, 1 * D:2 * D]
        v = qkv[:, 2 * D:3 * D]

        # per-head attention (static unroll); probabilities and contexts stay
        # in vregs (lane-concatenated) -- no VMEM scratch round-trip.
        p_parts = []
        ctx_parts = []
        for h in range(H):
            lo, hi = h * DH, (h + 1) * DH
            qh = q[:, lo:hi]                                  # (S, DH)
            kh = k[:, lo:hi]
            vh = v[:, lo:hi]
            # NT contraction: contract last dims directly (no kh.T transpose)
            s = lax.dot_general(qh, kh, (((1,), (1,)), ((), ())),
                                preferred_element_type=jnp.float32) * SCALE
            s = s - jnp.max(s, axis=-1, keepdims=True)
            e = jnp.exp(s)
            denom = jnp.sum(e, axis=-1, keepdims=True)
            p = e * pl.reciprocal(denom, approx=True)         # EUP divide
            p_parts.append(p)                                 # (S, S)
            ctx_parts.append(jnp.dot(p, vh,
                                     preferred_element_type=jnp.float32))

        attn_rows.append(jnp.concatenate(p_parts, axis=-1))   # (S, H*S)
        ctx = jnp.concatenate(ctx_parts, axis=-1)             # (S, D) in vregs

        attn_out = jnp.dot(ctx, wo_ref[l],
                           preferred_element_type=jnp.float32) + bo
        x = _layernorm(x + attn_out, g1, be1)

        ff = jnp.dot(x, w1_ref[l], preferred_element_type=jnp.float32) + b1
        ff = jnp.maximum(ff, 0.0)
        ff = jnp.dot(ff, w2_ref[l], preferred_element_type=jnp.float32) + b2
        x = _layernorm(x + ff, g2, be2)

    fn = fnorm_ref[...]                                       # (2, D)
    y = _layernorm(x, fn[0:1, :], fn[1:2, :])                 # (S, D)

    # Pack [attn layer 0 | attn layer 1 | final x | zero pad] into one
    # lane-dense (S, OUT_W) slab and write it with a single unmasked store.
    parts = attn_rows + [y]
    pad = OUT_W - (_ATTN_LANES + D)
    if pad:
        parts.append(jnp.zeros((S, pad), jnp.float32))
    out_ref[0] = jnp.concatenate(parts, axis=-1)              # (S, 128)


# ---------------------------------------------------------------------------
# Parameter packing + wrapper
# ---------------------------------------------------------------------------
def pack_params(layer_params, norm_params):
    wqkv_s, wo_s, w1_s, w2_s, vec_s = [], [], [], [], []
    for (wq, bq, wk, bk, wv, bv, wo, bo,
         g1, be1, w1, b1, w2, b2, g2, be2) in layer_params:
        wqkv_s.append(jnp.concatenate([wq, wk, wv], axis=1))          # (D, 3D)
        wo_s.append(wo)
        w1_s.append(w1)
        w2_s.append(w2)
        rows = [jnp.concatenate([bq, bk, bv], axis=-1).reshape(-1),
                bo.reshape(-1), b1.reshape(-1), b2.reshape(-1),
                g1.reshape(-1), be1.reshape(-1), g2.reshape(-1), be2.reshape(-1)]
        rows = [jnp.pad(r, (0, VEC_W - r.shape[0])) for r in rows]
        vec_s.append(jnp.stack(rows))                                 # (8, VEC_W)
    gamma, beta = norm_params
    fnorm = jnp.concatenate([gamma.reshape(1, D), beta.reshape(1, D)], axis=0)
    return (jnp.stack(wqkv_s), jnp.stack(wo_s), jnp.stack(w1_s),
            jnp.stack(w2_s), jnp.stack(vec_s), fnorm)


def encoder_forward(x, layer_params, norm_params, attn_mask=None):
    """Mirrors Encoder.forward with conv_layers=None, norm_layer=LayerNorm."""
    if attn_mask is not None:
        # TODO(synk): masked-attention path not implemented (module used with mask=None)
        raise NotImplementedError("attn_mask is not supported by this kernel")
    B = x.shape[0]
    wqkv, wo, w1, w2, vec, fnorm = pack_params(layer_params, norm_params)

    def full_spec(shape):
        nd = len(shape)
        return pl.BlockSpec(shape, lambda b, _nd=nd: (0,) * _nd)

    slab = pl.pallas_call(
        encoder_kernel,
        grid=(B,),
        in_specs=[pl.BlockSpec((1, S, D), lambda b: (b, 0, 0)),        # x
                  full_spec(wqkv.shape), full_spec(wo.shape),
                  full_spec(w1.shape), full_spec(w2.shape),
                  full_spec(vec.shape), full_spec(fnorm.shape)],
        out_specs=pl.BlockSpec((1, S, OUT_W), lambda b: (b, 0, 0)),
        out_shape=jax.ShapeDtypeStruct((B, S, OUT_W), jnp.float32),
        compiler_params=pltpu.CompilerParams(dimension_semantics=("parallel",)),
    )(x, wqkv, wo, w1, w2, vec, fnorm)

    # unpack: final x and per-layer attention weights (B, H, S, S)
    out = slab[:, :, _ATTN_LANES:_ATTN_LANES + D]
    attns = []
    for l in range(N_LAYERS):
        a = slab[:, :, l * H * S:(l + 1) * H * S]              # (B, S, H*S)
        attns.append(a.reshape(B, S, H, S).transpose(0, 2, 1, 3))
    return out, attns


# ---------------------------------------------------------------------------
# Pure-JAX reference (same math) for a correctness check
# ---------------------------------------------------------------------------
def ref_layer(x, params):
    wq, bq, wk, bk, wv, bv, wo, bo, g1, be1, w1, b1, w2, b2, g2, be2 = params
    q = x @ wq + bq
    k = x @ wk + bk
    v = x @ wv + bv
    B = x.shape[0]
    qh = q.reshape(B, S, H, DH).transpose(0, 2, 1, 3)
    kh = k.reshape(B, S, H, DH).transpose(0, 2, 1, 3)
    vh = v.reshape(B, S, H, DH).transpose(0, 2, 1, 3)
    scores = jnp.einsum("bhqd,bhkd->bhqk", qh, kh) / math.sqrt(DH)
    p = jax.nn.softmax(scores, axis=-1)
    ctx = jnp.einsum("bhqk,bhkd->bhqd", p, vh)
    ctx = ctx.transpose(0, 2, 1, 3).reshape(B, S, D)
    attn_out = ctx @ wo + bo
    x1 = _layernorm(x + attn_out, g1, be1)
    ff = jnp.maximum(x1 @ w1 + b1, 0.0) @ w2 + b2
    x2 = _layernorm(x1 + ff, g2, be2)
    return x2, p


def ref_encoder(x, layer_params, norm_params):
    attns = []
    for params in layer_params:
        x, p = ref_layer(x, params)
        attns.append(p)
    gamma, beta = norm_params
    return _layernorm(x, gamma, beta), attns


# ---------------------------------------------------------------------------
def init_params(key):
    layer_params = []
    for _ in range(N_LAYERS):
        key, *ks = jax.random.split(key, 7)
        wq = 0.05 * jax.random.normal(ks[0], (D, D), jnp.float32)
        wk = 0.05 * jax.random.normal(ks[1], (D, D), jnp.float32)
        wv = 0.05 * jax.random.normal(ks[2], (D, D), jnp.float32)
        wo = 0.05 * jax.random.normal(ks[3], (D, D), jnp.float32)
        w1 = 0.05 * jax.random.normal(ks[4], (D, D_FF), jnp.float32)
        w2 = 0.05 * jax.random.normal(ks[5], (D_FF, D), jnp.float32)
        bq = jnp.zeros((1, D), jnp.float32)
        bk = jnp.zeros((1, D), jnp.float32)
        bv = jnp.zeros((1, D), jnp.float32)
        bo = jnp.zeros((1, D), jnp.float32)
        b1 = jnp.full((1, D_FF), 0.01, jnp.float32)
        b2 = jnp.full((1, D), 0.01, jnp.float32)
        g1 = jnp.ones((1, D), jnp.float32)
        be1 = jnp.zeros((1, D), jnp.float32)
        g2 = jnp.ones((1, D), jnp.float32)
        be2 = jnp.zeros((1, D), jnp.float32)
        layer_params.append((wq, bq, wk, bk, wv, bv, wo, bo,
                             g1, be1, w1, b1, w2, b2, g2, be2))
    norm_params = (jnp.ones((1, D), jnp.float32), jnp.zeros((1, D), jnp.float32))
    return layer_params, norm_params, key


if __name__ == "__main__":
    key = jax.random.PRNGKey(0)
    layer_params, norm_params, key = init_params(key)
    key, xk = jax.random.split(key)
    B = 2
    x = jax.random.normal(xk, (B, S, D), jnp.float32)

    y, attns = encoder_forward(x, layer_params, norm_params, attn_mask=None)
    y = jax.block_until_ready(y)
    attns = [jax.block_until_ready(a) for a in attns]

    # correctness check against pure-JAX reference
    # (tolerance relaxed slightly vs exact math because the kernel uses the
    #  approximate EUP reciprocal for the softmax denominator, so returned
    #  attention probabilities sum to 1 only to ~1e-3)
    y_ref, attns_ref = ref_encoder(x, layer_params, norm_params)
    assert jnp.allclose(y, y_ref, rtol=5e-3, atol=5e-3), "output mismatch"
    for a, ar in zip(attns, attns_ref):
        assert jnp.allclose(a, ar, rtol=5e-3, atol=5e-3), "attn mismatch"

    print("KERNEL_OK")
</pallas_src>

<mosaic_0001>
module attributes {stable_mosaic.version = 11 : i64} {
  func.func @encoder_kernel(%arg0: i32, %arg1: memref<1x8x32xf32, #tpu.memory_space<vmem>>, %arg2: memref<2x32x96xf32, #tpu.memory_space<vmem>>, %arg3: memref<2x32x32xf32, #tpu.memory_space<vmem>>, %arg4: memref<2x32x64xf32, #tpu.memory_space<vmem>>, %arg5: memref<2x64x32xf32, #tpu.memory_space<vmem>>, %arg6: memref<2x8x128xf32, #tpu.memory_space<vmem>>, %arg7: memref<2x32xf32, #tpu.memory_space<vmem>>, %arg8: memref<1x8x128xf32, #tpu.memory_space<vmem>>) attributes {dimension_semantics = [#tpu.dimension_semantics<parallel>], iteration_bounds = array<i64: 2>, scalar_prefetch = 0 : i64, scratch_operands = 0 : i64, tpu.core_type = #tpu.core_type<tc>, window_params = [{transform_indices = @transform_0, window_bounds = array<i64: 1, 8, 32>}, {pipeline_mode = #tpu.pipeline_mode<synchronous>, transform_indices = @transform_1, window_bounds = array<i64: 2, 32, 96>}, {pipeline_mode = #tpu.pipeline_mode<synchronous>, transform_indices = @transform_2, window_bounds = array<i64: 2, 32, 32>}, {pipeline_mode = #tpu.pipeline_mode<synchronous>, transform_indices = @transform_3, window_bounds = array<i64: 2, 32, 64>}, {pipeline_mode = #tpu.pipeline_mode<synchronous>, transform_indices = @transform_4, window_bounds = array<i64: 2, 64, 32>}, {pipeline_mode = #tpu.pipeline_mode<synchronous>, transform_indices = @transform_5, window_bounds = array<i64: 2, 8, 128>}, {pipeline_mode = #tpu.pipeline_mode<synchronous>, transform_indices = @transform_6, window_bounds = array<i64: 2, 32>}, {transform_indices = @transform_7, window_bounds = array<i64: 1, 8, 128>}]} {
    %c0 = arith.constant 0 : index
    %c0_0 = arith.constant 0 : index
    %c0_1 = arith.constant 0 : index
    %0 = vector.load %arg1[%c0, %c0_0, %c0_1] : memref<1x8x32xf32, #tpu.memory_space<vmem>>, vector<1x8x32xf32>
    %1 = vector.shape_cast %0 : vector<1x8x32xf32> to vector<8x32xf32>
    %c0_2 = arith.constant 0 : index
    %c0_3 = arith.constant 0 : index
    %c0_4 = arith.constant 0 : index
    %2 = vector.load %arg6[%c0_2, %c0_3, %c0_4] : memref<2x8x128xf32, #tpu.memory_space<vmem>>, vector<1x8x128xf32>
    %3 = vector.shape_cast %2 : vector<1x8x128xf32> to vector<8x128xf32>
    %4 = vector.extract_strided_slice %3 {offsets = [0, 0], sizes = [1, 96], strides = [1, 1]} : vector<8x128xf32> to vector<1x96xf32>
    %5 = vector.extract_strided_slice %3 {offsets = [1, 0], sizes = [1, 32], strides = [1, 1]} : vector<8x128xf32> to vector<1x32xf32>
    %6 = vector.extract_strided_slice %3 {offsets = [2, 0], sizes = [1, 64], strides = [1, 1]} : vector<8x128xf32> to vector<1x64xf32>
    %7 = vector.extract_strided_slice %3 {offsets = [3, 0], sizes = [1, 32], strides = [1, 1]} : vector<8x128xf32> to vector<1x32xf32>
    %8 = vector.extract_strided_slice %3 {offsets = [4, 0], sizes = [1, 32], strides = [1, 1]} : vector<8x128xf32> to vector<1x32xf32>
    %9 = vector.extract_strided_slice %3 {offsets = [5, 0], sizes = [1, 32], strides = [1, 1]} : vector<8x128xf32> to vector<1x32xf32>
    %10 = vector.extract_strided_slice %3 {offsets = [6, 0], sizes = [1, 32], strides = [1, 1]} : vector<8x128xf32> to vector<1x32xf32>
    %11 = vector.extract_strided_slice %3 {offsets = [7, 0], sizes = [1, 32], strides = [1, 1]} : vector<8x128xf32> to vector<1x32xf32>
    %c0_5 = arith.constant 0 : index
    %c0_6 = arith.constant 0 : index
    %c0_7 = arith.constant 0 : index
    %12 = vector.load %arg2[%c0_5, %c0_6, %c0_7] : memref<2x32x96xf32, #tpu.memory_space<vmem>>, vector<1x32x96xf32>
    %13 = vector.shape_cast %12 : vector<1x32x96xf32> to vector<32x96xf32>
    %cst = arith.constant dense<0.000000e+00> : vector<8x96xf32>
    %14 = tpu.matmul %1, %13, %cst {dimension_numbers = #tpu.dot_dimension_numbers<[1], [0], [0], [1], [0, 0, 1, 1], [], []>} : vector<8x32xf32>, vector<32x96xf32>, vector<8x96xf32> -> vector<8x96xf32>
    %15 = vector.broadcast %4 : vector<1x96xf32> to vector<8x96xf32>
    %16 = arith.addf %14, %15 : vector<8x96xf32>
    %17 = vector.extract_strided_slice %16 {offsets = [0, 0], sizes = [8, 32], strides = [1, 1]} : vector<8x96xf32> to vector<8x32xf32>
    %18 = vector.extract_strided_slice %16 {offsets = [0, 32], sizes = [8, 32], strides = [1, 1]} : vector<8x96xf32> to vector<8x32xf32>
    %19 = vector.extract_strided_slice %16 {offsets = [0, 64], sizes = [8, 32], strides = [1, 1]} : vector<8x96xf32> to vector<8x32xf32>
    %20 = vector.extract_strided_slice %17 {offsets = [0, 0], sizes = [8, 8], strides = [1, 1]} : vector<8x32xf32> to vector<8x8xf32>
    %21 = vector.extract_strided_slice %18 {offsets = [0, 0], sizes = [8, 8], strides = [1, 1]} : vector<8x32xf32> to vector<8x8xf32>
    %22 = vector.extract_strided_slice %19 {offsets = [0, 0], sizes = [8, 8], strides = [1, 1]} : vector<8x32xf32> to vector<8x8xf32>
    %cst_8 = arith.constant dense<0.000000e+00> : vector<8x8xf32>
    %23 = tpu.matmul %20, %21, %cst_8 {dimension_numbers = #tpu.dot_dimension_numbers<[1], [1], [0], [0], [0, 0, 1, 0], [], []>} : vector<8x8xf32>, vector<8x8xf32>, vector<8x8xf32> -> vector<8x8xf32>
    %cst_9 = arith.constant 0.353553385 : f32
    %24 = vector.broadcast %cst_9 : f32 to vector<8x8xf32>
    %25 = arith.mulf %23, %24 : vector<8x8xf32>
    %cst_10 = arith.constant dense<0xFF800000> : vector<8xf32>
    %26 = vector.multi_reduction <maximumf>, %25, %cst_10 [1] : vector<8x8xf32> to vector<8xf32>
    %27 = vector.shape_cast %26 : vector<8xf32> to vector<8x1xf32>
    %28 = vector.broadcast %27 : vector<8x1xf32> to vector<8x8xf32>
    %29 = arith.subf %25, %28 : vector<8x8xf32>
    %30 = math.exp %29 : vector<8x8xf32>
    %cst_11 = arith.constant dense<0.000000e+00> : vector<8xf32>
    %31 = vector.multi_reduction <add>, %30, %cst_11 [1] : vector<8x8xf32> to vector<8xf32>
    %32 = vector.shape_cast %31 : vector<8xf32> to vector<8x1xf32>
    %33 = tpu.reciprocal %32 {approx = true} : vector<8x1xf32> -> vector<8x1xf32>
    %34 = vector.broadcast %33 : vector<8x1xf32> to vector<8x8xf32>
    %35 = arith.mulf %30, %34 : vector<8x8xf32>
    %cst_12 = arith.constant dense<0.000000e+00> : vector<8x8xf32>
    %36 = tpu.matmul %35, %22, %cst_12 {dimension_numbers = #tpu.dot_dimension_numbers<[1], [0], [0], [1], [0, 0, 1, 1], [], []>} : vector<8x8xf32>, vector<8x8xf32>, vector<8x8xf32> -> vector<8x8xf32>
    %37 = vector.extract_strided_slice %17 {offsets = [0, 8], sizes = [8, 8], strides = [1, 1]} : vector<8x32xf32> to vector<8x8xf32>
    %38 = vector.extract_strided_slice %18 {offsets = [0, 8], sizes = [8, 8], strides = [1, 1]} : vector<8x32xf32> to vector<8x8xf32>
    %39 = vector.extract_strided_slice %19 {offsets = [0, 8], sizes = [8, 8], strides = [1, 1]} : vector<8x32xf32> to vector<8x8xf32>
    %cst_13 = arith.constant dense<0.000000e+00> : vector<8x8xf32>
    %40 = tpu.matmul %37, %38, %cst_13 {dimension_numbers = #tpu.dot_dimension_numbers<[1], [1], [0], [0], [0, 0, 1, 0], [], []>} : vector<8x8xf32>, vector<8x8xf32>, vector<8x8xf32> -> vector<8x8xf32>
    %cst_14 = arith.constant 0.353553385 : f32
    %41 = vector.broadcast %cst_14 : f32 to vector<8x8xf32>
    %42 = arith.mulf %40, %41 : vector<8x8xf32>
    %cst_15 = arith.constant dense<0xFF800000> : vector<8xf32>
    %43 = vector.multi_reduction <maximumf>, %42, %cst_15 [1] : vector<8x8xf32> to vector<8xf32>
    %44 = vector.shape_cast %43 : vector<8xf32> to vector<8x1xf32>
    %45 = vector.broadcast %44 : vector<8x1xf32> to vector<8x8xf32>
    %46 = arith.subf %42, %45 : vector<8x8xf32>
    %47 = math.exp %46 : vector<8x8xf32>
    %cst_16 = arith.constant dense<0.000000e+00> : vector<8xf32>
    %48 = vector.multi_reduction <add>, %47, %cst_16 [1] : vector<8x8xf32> to vector<8xf32>
    %49 = vector.shape_cast %48 : vector<8xf32> to vector<8x1xf32>
    %50 = tpu.reciprocal %49 {approx = true} : vector<8x1xf32> -> vector<8x1xf32>
    %51 = vector.broadcast %50 : vector<8x1xf32> to vector<8x8xf32>
    %52 = arith.mulf %47, %51 : vector<8x8xf32>
    %cst_17 = arith.constant dense<0.000000e+00> : vector<8x8xf32>
    %53 = tpu.matmul %52, %39, %cst_17 {dimension_numbers = #tpu.dot_dimension_numbers<[1], [0], [0], [1], [0, 0, 1, 1], [], []>} : vector<8x8xf32>, vector<8x8xf32>, vector<8x8xf32> -> vector<8x8xf32>
    %54 = vector.extract_strided_slice %17 {offsets = [0, 16], sizes = [8, 8], strides = [1, 1]} : vector<8x32xf32> to vector<8x8xf32>
    %55 = vector.extract_strided_slice %18 {offsets = [0, 16], sizes = [8, 8], strides = [1, 1]} : vector<8x32xf32> to vector<8x8xf32>
    %56 = vector.extract_strided_slice %19 {offsets = [0, 16], sizes = [8, 8], strides = [1, 1]} : vector<8x32xf32> to vector<8x8xf32>
    %cst_18 = arith.constant dense<0.000000e+00> : vector<8x8xf32>
    %57 = tpu.matmul %54, %55, %cst_18 {dimension_numbers = #tpu.dot_dimension_numbers<[1], [1], [0], [0], [0, 0, 1, 0], [], []>} : vector<8x8xf32>, vector<8x8xf32>, vector<8x8xf32> -> vector<8x8xf32>
    %cst_19 = arith.constant 0.353553385 : f32
    %58 = vector.broadcast %cst_19 : f32 to vector<8x8xf32>
    %59 = arith.mulf %57, %58 : vector<8x8xf32>
    %cst_20 = arith.constant dense<0xFF800000> : vector<8xf32>
    %60 = vector.multi_reduction <maximumf>, %59, %cst_20 [1] : vector<8x8xf32> to vector<8xf32>
    %61 = vector.shape_cast %60 : vector<8xf32> to vector<8x1xf32>
    %62 = vector.broadcast %61 : vector<8x1xf32> to vector<8x8xf32>
    %63 = arith.subf %59, %62 : vector<8x8xf32>
    %64 = math.exp %63 : vector<8x8xf32>
    %cst_21 = arith.constant dense<0.000000e+00> : vector<8xf32>
    %65 = vector.multi_reduction <add>, %64, %cst_21 [1] : vector<8x8xf32> to vector<8xf32>
    %66 = vector.shape_cast %65 : vector<8xf32> to vector<8x1xf32>
    %67 = tpu.reciprocal %66 {approx = true} : vector<8x1xf32> -> vector<8x1xf32>
    %68 = vector.broadcast %67 : vector<8x1xf32> to vector<8x8xf32>
    %69 = arith.mulf %64, %68 : vector<8x8xf32>
    %cst_22 = arith.constant dense<0.000000e+00> : vector<8x8xf32>
    %70 = tpu.matmul %69, %56, %cst_22 {dimension_numbers = #tpu.dot_dimension_numbers<[1], [0], [0], [1], [0, 0, 1, 1], [], []>} : vector<8x8xf32>, vector<8x8xf32>, vector<8x8xf32> -> vector<8x8xf32>
    %71 = vector.extract_strided_slice %17 {offsets = [0, 24], sizes = [8, 8], strides = [1, 1]} : vector<8x32xf32> to vector<8x8xf32>
    %72 = vector.extract_strided_slice %18 {offsets = [0, 24], sizes = [8, 8], strides = [1, 1]} : vector<8x32xf32> to vector<8x8xf32>
    %73 = vector.extract_strided_slice %19 {offsets = [0, 24], sizes = [8, 8], strides = [1, 1]} : vector<8x32xf32> to vector<8x8xf32>
    %cst_23 = arith.constant dense<0.000000e+00> : vector<8x8xf32>
    %74 = tpu.matmul %71, %72, %cst_23 {dimension_numbers = #tpu.dot_dimension_numbers<[1], [1], [0], [0], [0, 0, 1, 0], [], []>} : vector<8x8xf32>, vector<8x8xf32>, vector<8x8xf32> -> vector<8x8xf32>
    %cst_24 = arith.constant 0.353553385 : f32
    %75 = vector.broadcast %cst_24 : f32 to vector<8x8xf32>
    %76 = arith.mulf %74, %75 : vector<8x8xf32>
    %cst_25 = arith.constant dense<0xFF800000> : vector<8xf32>
    %77 = vector.multi_reduction <maximumf>, %76, %cst_25 [1] : vector<8x8xf32> to vector<8xf32>
    %78 = vector.shape_cast %77 : vector<8xf32> to vector<8x1xf32>
    %79 = vector.broadcast %78 : vector<8x1xf32> to vector<8x8xf32>
    %80 = arith.subf %76, %79 : vector<8x8xf32>
    %81 = math.exp %80 : vector<8x8xf32>
    %cst_26 = arith.constant dense<0.000000e+00> : vector<8xf32>
    %82 = vector.multi_reduction <add>, %81, %cst_26 [1] : vector<8x8xf32> to vector<8xf32>
    %83 = vector.shape_cast %82 : vector<8xf32> to vector<8x1xf32>
    %84 = tpu.reciprocal %83 {approx = true} : vector<8x1xf32> -> vector<8x1xf32>
    %85 = vector.broadcast %84 : vector<8x1xf32> to vector<8x8xf32>
    %86 = arith.mulf %81, %85 : vector<8x8xf32>
    %cst_27 = arith.constant dense<0.000000e+00> : vector<8x8xf32>
    %87 = tpu.matmul %86, %73, %cst_27 {dimension_numbers = #tpu.dot_dimension_numbers<[1], [0], [0], [1], [0, 0, 1, 1], [], []>} : vector<8x8xf32>, vector<8x8xf32>, vector<8x8xf32> -> vector<8x8xf32>
    %88 = tpu.concatenate %35, %52, %69, %86 in 1 : vector<8x8xf32>, vector<8x8xf32>, vector<8x8xf32>, vector<8x8xf32> -> vector<8x32xf32>
    %89 = tpu.concatenate %36, %53, %70, %87 in 1 : vector<8x8xf32>, vector<8x8xf32>, vector<8x8xf32>, vector<8x8xf32> -> vector<8x32xf32>
    %c0_28 = arith.constant 0 : index
    %c0_29 = arith.constant 0 : index
    %c0_30 = arith.constant 0 : index
    %90 = vector.load %arg3[%c0_28, %c0_29, %c0_30] : memref<2x32x32xf32, #tpu.memory_space<vmem>>, vector<1x32x32xf32>
    %91 = vector.shape_cast %90 : vector<1x32x32xf32> to vector<32x32xf32>
    %cst_31 = arith.constant dense<0.000000e+00> : vector<8x32xf32>
    %92 = tpu.matmul %89, %91, %cst_31 {dimension_numbers = #tpu.dot_dimension_numbers<[1], [0], [0], [1], [0, 0, 1, 1], [], []>} : vector<8x32xf32>, vector<32x32xf32>, vector<8x32xf32> -> vector<8x32xf32>
    %93 = vector.broadcast %5 : vector<1x32xf32> to vector<8x32xf32>
    %94 = arith.addf %92, %93 : vector<8x32xf32>
    %95 = arith.addf %1, %94 : vector<8x32xf32>
    %cst_32 = arith.constant dense<0.000000e+00> : vector<8xf32>
    %96 = vector.multi_reduction <add>, %95, %cst_32 [1] : vector<8x32xf32> to vector<8xf32>
    %97 = vector.shape_cast %96 : vector<8xf32> to vector<8x1xf32>
    %cst_33 = arith.constant 3.200000e+01 : f32
    %98 = vector.broadcast %cst_33 : f32 to vector<8x1xf32>
    %99 = arith.divf %97, %98 : vector<8x1xf32>
    %100 = vector.broadcast %99 : vector<8x1xf32> to vector<8x32xf32>
    %101 = arith.subf %95, %100 : vector<8x32xf32>
    %102 = arith.mulf %101, %101 : vector<8x32xf32>
    %cst_34 = arith.constant dense<0.000000e+00> : vector<8xf32>
    %103 = vector.multi_reduction <add>, %102, %cst_34 [1] : vector<8x32xf32> to vector<8xf32>
    %104 = vector.shape_cast %103 : vector<8xf32> to vector<8x1xf32>
    %cst_35 = arith.constant 3.200000e+01 : f32
    %105 = vector.broadcast %cst_35 : f32 to vector<8x1xf32>
    %106 = arith.divf %104, %105 : vector<8x1xf32>
    %107 = vector.broadcast %99 : vector<8x1xf32> to vector<8x32xf32>
    %108 = arith.subf %95, %107 : vector<8x32xf32>
    %cst_36 = arith.constant 9.99999974E-6 : f32
    %109 = vector.broadcast %cst_36 : f32 to vector<8x1xf32>
    %110 = arith.addf %106, %109 : vector<8x1xf32>
    %111 = math.rsqrt %110 : vector<8x1xf32>
    %112 = vector.broadcast %111 : vector<8x1xf32> to vector<8x32xf32>
    %113 = arith.mulf %108, %112 : vector<8x32xf32>
    %114 = vector.broadcast %8 : vector<1x32xf32> to vector<8x32xf32>
    %115 = arith.mulf %113, %114 : vector<8x32xf32>
    %116 = vector.broadcast %9 : vector<1x32xf32> to vector<8x32xf32>
    %117 = arith.addf %115, %116 : vector<8x32xf32>
    %c0_37 = arith.constant 0 : index
    %c0_38 = arith.constant 0 : index
    %c0_39 = arith.constant 0 : index
    %118 = vector.load %arg4[%c0_37, %c0_38, %c0_39] : memref<2x32x64xf32, #tpu.memory_space<vmem>>, vector<1x32x64xf32>
    %119 = vector.shape_cast %118 : vector<1x32x64xf32> to vector<32x64xf32>
    %cst_40 = arith.constant dense<0.000000e+00> : vector<8x64xf32>
    %120 = tpu.matmul %117, %119, %cst_40 {dimension_numbers = #tpu.dot_dimension_numbers<[1], [0], [0], [1], [0, 0, 1, 1], [], []>} : vector<8x32xf32>, vector<32x64xf32>, vector<8x64xf32> -> vector<8x64xf32>
    %121 = vector.broadcast %6 : vector<1x64xf32> to vector<8x64xf32>
    %122 = arith.addf %120, %121 : vector<8x64xf32>
    %cst_41 = arith.constant 0.000000e+00 : f32
    %123 = vector.broadcast %cst_41 : f32 to vector<8x64xf32>
    %124 = arith.maximumf %122, %123 : vector<8x64xf32>
    %c0_42 = arith.constant 0 : index
    %c0_43 = arith.constant 0 : index
    %c0_44 = arith.constant 0 : index
    %125 = vector.load %arg5[%c0_42, %c0_43, %c0_44] : memref<2x64x32xf32, #tpu.memory_space<vmem>>, vector<1x64x32xf32>
    %126 = vector.shape_cast %125 : vector<1x64x32xf32> to vector<64x32xf32>
    %cst_45 = arith.constant dense<0.000000e+00> : vector<8x32xf32>
    %127 = tpu.matmul %124, %126, %cst_45 {dimension_numbers = #tpu.dot_dimension_numbers<[1], [0], [0], [1], [0, 0, 1, 1], [], []>} : vector<8x64xf32>, vector<64x32xf32>, vector<8x32xf32> -> vector<8x32xf32>
    %128 = vector.broadcast %7 : vector<1x32xf32> to vector<8x32xf32>
    %129 = arith.addf %127, %128 : vector<8x32xf32>
    %130 = arith.addf %117, %129 : vector<8x32xf32>
    %cst_46 = arith.constant dense<0.000000e+00> : vector<8xf32>
    %131 = vector.multi_reduction <add>, %130, %cst_46 [1] : vector<8x32xf32> to vector<8xf32>
    %132 = vector.shape_cast %131 : vector<8xf32> to vector<8x1xf32>
    %cst_47 = arith.constant 3.200000e+01 : f32
    %133 = vector.broadcast %cst_47 : f32 to vector<8x1xf32>
    %134 = arith.divf %132, %133 : vector<8x1xf32>
    %135 = vector.broadcast %134 : vector<8x1xf32> to vector<8x32xf32>
    %136 = arith.subf %130, %135 : vector<8x32xf32>
    %137 = arith.mulf %136, %136 : vector<8x32xf32>
    %cst_48 = arith.constant dense<0.000000e+00> : vector<8xf32>
    %138 = vector.multi_reduction <add>, %137, %cst_48 [1] : vector<8x32xf32> to vector<8xf32>
    %139 = vector.shape_cast %138 : vector<8xf32> to vector<8x1xf32>
    %cst_49 = arith.constant 3.200000e+01 : f32
    %140 = vector.broadcast %cst_49 : f32 to vector<8x1xf32>
    %141 = arith.divf %139, %140 : vector<8x1xf32>
    %142 = vector.broadcast %134 : vector<8x1xf32> to vector<8x32xf32>
    %143 = arith.subf %130, %142 : vector<8x32xf32>
    %cst_50 = arith.constant 9.99999974E-6 : f32
    %144 = vector.broadcast %cst_50 : f32 to vector<8x1xf32>
    %145 = arith.addf %141, %144 : vector<8x1xf32>
    %146 = math.rsqrt %145 : vector<8x1xf32>
    %147 = vector.broadcast %146 : vector<8x1xf32> to vector<8x32xf32>
    %148 = arith.mulf %143, %147 : vector<8x32xf32>
    %149 = vector.broadcast %10 : vector<1x32xf32> to vector<8x32xf32>
    %150 = arith.mulf %148, %149 : vector<8x32xf32>
    %151 = vector.broadcast %11 : vector<1x32xf32> to vector<8x32xf32>
    %152 = arith.addf %150, %151 : vector<8x32xf32>
    %c1 = arith.constant 1 : index
    %c0_51 = arith.constant 0 : index
    %c0_52 = arith.constant 0 : index
    %153 = vector.load %arg6[%c1, %c0_51, %c0_52] : memref<2x8x128xf32, #tpu.memory_space<vmem>>, vector<1x8x128xf32>
    %154 = vector.shape_cast %153 : vector<1x8x128xf32> to vector<8x128xf32>
    %155 = vector.extract_strided_slice %154 {offsets = [0, 0], sizes = [1, 96], strides = [1, 1]} : vector<8x128xf32> to vector<1x96xf32>
    %156 = vector.extract_strided_slice %154 {offsets = [1, 0], sizes = [1, 32], strides = [1, 1]} : vector<8x128xf32> to vector<1x32xf32>
    %157 = vector.extract_strided_slice %154 {offsets = [2, 0], sizes = [1, 64], strides = [1, 1]} : vector<8x128xf32> to vector<1x64xf32>
    %158 = vector.extract_strided_slice %154 {offsets = [3, 0], sizes = [1, 32], strides = [1, 1]} : vector<8x128xf32> to vector<1x32xf32>
    %159 = vector.extract_strided_slice %154 {offsets = [4, 0], sizes = [1, 32], strides = [1, 1]} : vector<8x128xf32> to vector<1x32xf32>
    %160 = vector.extract_strided_slice %154 {offsets = [5, 0], sizes = [1, 32], strides = [1, 1]} : vector<8x128xf32> to vector<1x32xf32>
    %161 = vector.extract_strided_slice %154 {offsets = [6, 0], sizes = [1, 32], strides = [1, 1]} : vector<8x128xf32> to vector<1x32xf32>
    %162 = vector.extract_strided_slice %154 {offsets = [7, 0], sizes = [1, 32], strides = [1, 1]} : vector<8x128xf32> to vector<1x32xf32>
    %c1_53 = arith.constant 1 : index
    %c0_54 = arith.constant 0 : index
    %c0_55 = arith.constant 0 : index
    %163 = vector.load %arg2[%c1_53, %c0_54, %c0_55] : memref<2x32x96xf32, #tpu.memory_space<vmem>>, vector<1x32x96xf32>
    %164 = vector.shape_cast %163 : vector<1x32x96xf32> to vector<32x96xf32>
    %cst_56 = arith.constant dense<0.000000e+00> : vector<8x96xf32>
    %165 = tpu.matmul %152, %164, %cst_56 {dimension_numbers = #tpu.dot_dimension_numbers<[1], [0], [0], [1], [0, 0, 1, 1], [], []>} : vector<8x32xf32>, vector<32x96xf32>, vector<8x96xf32> -> vector<8x96xf32>
    %166 = vector.broadcast %155 : vector<1x96xf32> to vector<8x96xf32>
    %167 = arith.addf %165, %166 : vector<8x96xf32>
    %168 = vector.extract_strided_slice %167 {offsets = [0, 0], sizes = [8, 32], strides = [1, 1]} : vector<8x96xf32> to vector<8x32xf32>
    %169 = vector.extract_strided_slice %167 {offsets = [0, 32], sizes = [8, 32], strides = [1, 1]} : vector<8x96xf32> to vector<8x32xf32>
    %170 = vector.extract_strided_slice %167 {offsets = [0, 64], sizes = [8, 32], strides = [1, 1]} : vector<8x96xf32> to vector<8x32xf32>
    %171 = vector.extract_strided_slice %168 {offsets = [0, 0], sizes = [8, 8], strides = [1, 1]} : vector<8x32xf32> to vector<8x8xf32>
    %172 = vector.extract_strided_slice %169 {offsets = [0, 0], sizes = [8, 8], strides = [1, 1]} : vector<8x32xf32> to vector<8x8xf32>
    %173 = vector.extract_strided_slice %170 {offsets = [0, 0], sizes = [8, 8], strides = [1, 1]} : vector<8x32xf32> to vector<8x8xf32>
    %cst_57 = arith.constant dense<0.000000e+00> : vector<8x8xf32>
    %174 = tpu.matmul %171, %172, %cst_57 {dimension_numbers = #tpu.dot_dimension_numbers<[1], [1], [0], [0], [0, 0, 1, 0], [], []>} : vector<8x8xf32>, vector<8x8xf32>, vector<8x8xf32> -> vector<8x8xf32>
    %cst_58 = arith.constant 0.353553385 : f32
    %175 = vector.broadcast %cst_58 : f32 to vector<8x8xf32>
    %176 = arith.mulf %174, %175 : vector<8x8xf32>
    %cst_59 = arith.constant dense<0xFF800000> : vector<8xf32>
    %177 = vector.multi_reduction <maximumf>, %176, %cst_59 [1] : vector<8x8xf32> to vector<8xf32>
    %178 = vector.shape_cast %177 : vector<8xf32> to vector<8x1xf32>
    %179 = vector.broadcast %178 : vector<8x1xf32> to vector<8x8xf32>
    %180 = arith.subf %176, %179 : vector<8x8xf32>
    %181 = math.exp %180 : vector<8x8xf32>
    %cst_60 = arith.constant dense<0.000000e+00> : vector<8xf32>
    %182 = vector.multi_reduction <add>, %181, %cst_60 [1] : vector<8x8xf32> to vector<8xf32>
    %183 = vector.shape_cast %182 : vector<8xf32> to vector<8x1xf32>
    %184 = tpu.reciprocal %183 {approx = true} : vector<8x1xf32> -> vector<8x1xf32>
    %185 = vector.broadcast %184 : vector<8x1xf32> to vector<8x8xf32>
    %186 = arith.mulf %181, %185 : vector<8x8xf32>
    %cst_61 = arith.constant dense<0.000000e+00> : vector<8x8xf32>
    %187 = tpu.matmul %186, %173, %cst_61 {dimension_numbers = #tpu.dot_dimension_numbers<[1], [0], [0], [1], [0, 0, 1, 1], [], []>} : vector<8x8xf32>, vector<8x8xf32>, vector<8x8xf32> -> vector<8x8xf32>
    %188 = vector.extract_strided_slice %168 {offsets = [0, 8], sizes = [8, 8], strides = [1, 1]} : vector<8x32xf32> to vector<8x8xf32>
    %189 = vector.extract_strided_slice %169 {offsets = [0, 8], sizes = [8, 8], strides = [1, 1]} : vector<8x32xf32> to vector<8x8xf32>
    %190 = vector.extract_strided_slice %170 {offsets = [0, 8], sizes = [8, 8], strides = [1, 1]} : vector<8x32xf32> to vector<8x8xf32>
    %cst_62 = arith.constant dense<0.000000e+00> : vector<8x8xf32>
    %191 = tpu.matmul %188, %189, %cst_62 {dimension_numbers = #tpu.dot_dimension_numbers<[1], [1], [0], [0], [0, 0, 1, 0], [], []>} : vector<8x8xf32>, vector<8x8xf32>, vector<8x8xf32> -> vector<8x8xf32>
    %cst_63 = arith.constant 0.353553385 : f32
    %192 = vector.broadcast %cst_63 : f32 to vector<8x8xf32>
    %193 = arith.mulf %191, %192 : vector<8x8xf32>
    %cst_64 = arith.constant dense<0xFF800000> : vector<8xf32>
    %194 = vector.multi_reduction <maximumf>, %193, %cst_64 [1] : vector<8x8xf32> to vector<8xf32>
    %195 = vector.shape_cast %194 : vector<8xf32> to vector<8x1xf32>
    %196 = vector.broadcast %195 : vector<8x1xf32> to vector<8x8xf32>
    %197 = arith.subf %193, %196 : vector<8x8xf32>
    %198 = math.exp %197 : vector<8x8xf32>
    %cst_65 = arith.constant dense<0.000000e+00> : vector<8xf32>
    %199 = vector.multi_reduction <add>, %198, %cst_65 [1] : vector<8x8xf32> to vector<8xf32>
    %200 = vector.shape_cast %199 : vector<8xf32> to vector<8x1xf32>
    %201 = tpu.reciprocal %200 {approx = true} : vector<8x1xf32> -> vector<8x1xf32>
    %202 = vector.broadcast %201 : vector<8x1xf32> to vector<8x8xf32>
    %203 = arith.mulf %198, %202 : vector<8x8xf32>
    %cst_66 = arith.constant dense<0.000000e+00> : vector<8x8xf32>
    %204 = tpu.matmul %203, %190, %cst_66 {dimension_numbers = #tpu.dot_dimension_numbers<[1], [0], [0], [1], [0, 0, 1, 1], [], []>} : vector<8x8xf32>, vector<8x8xf32>, vector<8x8xf32> -> vector<8x8xf32>
    %205 = vector.extract_strided_slice %168 {offsets = [0, 16], sizes = [8, 8], strides = [1, 1]} : vector<8x32xf32> to vector<8x8xf32>
    %206 = vector.extract_strided_slice %169 {offsets = [0, 16], sizes = [8, 8], strides = [1, 1]} : vector<8x32xf32> to vector<8x8xf32>
    %207 = vector.extract_strided_slice %170 {offsets = [0, 16], sizes = [8, 8], strides = [1, 1]} : vector<8x32xf32> to vector<8x8xf32>
    %cst_67 = arith.constant dense<0.000000e+00> : vector<8x8xf32>
    %208 = tpu.matmul %205, %206, %cst_67 {dimension_numbers = #tpu.dot_dimension_numbers<[1], [1], [0], [0], [0, 0, 1, 0], [], []>} : vector<8x8xf32>, vector<8x8xf32>, vector<8x8xf32> -> vector<8x8xf32>
    %cst_68 = arith.constant 0.353553385 : f32
    %209 = vector.broadcast %cst_68 : f32 to vector<8x8xf32>
    %210 = arith.mulf %208, %209 : vector<8x8xf32>
    %cst_69 = arith.constant dense<0xFF800000> : vector<8xf32>
    %211 = vector.multi_reduction <maximumf>, %210, %cst_69 [1] : vector<8x8xf32> to vector<8xf32>
    %212 = vector.shape_cast %211 : vector<8xf32> to vector<8x1xf32>
    %213 = vector.broadcast %212 : vector<8x1xf32> to vector<8x8xf32>
    %214 = arith.subf %210, %213 : vector<8x8xf32>
    %215 = math.exp %214 : vector<8x8xf32>
    %cst_70 = arith.constant dense<0.000000e+00> : vector<8xf32>
    %216 = vector.multi_reduction <add>, %215, %cst_70 [1] : vector<8x8xf32> to vector<8xf32>
    %217 = vector.shape_cast %216 : vector<8xf32> to vector<8x1xf32>
    %218 = tpu.reciprocal %217 {approx = true} : vector<8x1xf32> -> vector<8x1xf32>
    %219 = vector.broadcast %218 : vector<8x1xf32> to vector<8x8xf32>
    %220 = arith.mulf %215, %219 : vector<8x8xf32>
    %cst_71 = arith.constant dense<0.000000e+00> : vector<8x8xf32>
    %221 = tpu.matmul %220, %207, %cst_71 {dimension_numbers = #tpu.dot_dimension_numbers<[1], [0], [0], [1], [0, 0, 1, 1], [], []>} : vector<8x8xf32>, vector<8x8xf32>, vector<8x8xf32> -> vector<8x8xf32>
    %222 = vector.extract_strided_slice %168 {offsets = [0, 24], sizes = [8, 8], strides = [1, 1]} : vector<8x32xf32> to vector<8x8xf32>
    %223 = vector.extract_strided_slice %169 {offsets = [0, 24], sizes = [8, 8], strides = [1, 1]} : vector<8x32xf32> to vector<8x8xf32>
    %224 = vector.extract_strided_slice %170 {offsets = [0, 24], sizes = [8, 8], strides = [1, 1]} : vector<8x32xf32> to vector<8x8xf32>
    %cst_72 = arith.constant dense<0.000000e+00> : vector<8x8xf32>
    %225 = tpu.matmul %222, %223, %cst_72 {dimension_numbers = #tpu.dot_dimension_numbers<[1], [1], [0], [0], [0, 0, 1, 0], [], []>} : vector<8x8xf32>, vector<8x8xf32>, vector<8x8xf32> -> vector<8x8xf32>
    %cst_73 = arith.constant 0.353553385 : f32
    %226 = vector.broadcast %cst_73 : f32 to vector<8x8xf32>
    %227 = arith.mulf %225, %226 : vector<8x8xf32>
    %cst_74 = arith.constant dense<0xFF800000> : vector<8xf32>
    %228 = vector.multi_reduction <maximumf>, %227, %cst_74 [1] : vector<8x8xf32> to vector<8xf32>
    %229 = vector.shape_cast %228 : vector<8xf32> to vector<8x1xf32>
    %230 = vector.broadcast %229 : vector<8x1xf32> to vector<8x8xf32>
    %231 = arith.subf %227, %230 : vector<8x8xf32>
    %232 = math.exp %231 : vector<8x8xf32>
    %cst_75 = arith.constant dense<0.000000e+00> : vector<8xf32>
    %233 = vector.multi_reduction <add>, %232, %cst_75 [1] : vector<8x8xf32> to vector<8xf32>
    %234 = vector.shape_cast %233 : vector<8xf32> to vector<8x1xf32>
    %235 = tpu.reciprocal %234 {approx = true} : vector<8x1xf32> -> vector<8x1xf32>
    %236 = vector.broadcast %235 : vector<8x1xf32> to vector<8x8xf32>
    %237 = arith.mulf %232, %236 : vector<8x8xf32>
    %cst_76 = arith.constant dense<0.000000e+00> : vector<8x8xf32>
    %238 = tpu.matmul %237, %224, %cst_76 {dimension_numbers = #tpu.dot_dimension_numbers<[1], [0], [0], [1], [0, 0, 1, 1], [], []>} : vector<8x8xf32>, vector<8x8xf32>, vector<8x8xf32> -> vector<8x8xf32>
    %239 = tpu.concatenate %186, %203, %220, %237 in 1 : vector<8x8xf32>, vector<8x8xf32>, vector<8x8xf32>, vector<8x8xf32> -> vector<8x32xf32>
    %240 = tpu.concatenate %187, %204, %221, %238 in 1 : vector<8x8xf32>, vector<8x8xf32>, vector<8x8xf32>, vector<8x8xf32> -> vector<8x32xf32>
    %c1_77 = arith.constant 1 : index
    %c0_78 = arith.constant 0 : index
    %c0_79 = arith.constant 0 : index
    %241 = vector.load %arg3[%c1_77, %c0_78, %c0_79] : memref<2x32x32xf32, #tpu.memory_space<vmem>>, vector<1x32x32xf32>
    %242 = vector.shape_cast %241 : vector<1x32x32xf32> to vector<32x32xf32>
    %cst_80 = arith.constant dense<0.000000e+00> : vector<8x32xf32>
    %243 = tpu.matmul %240, %242, %cst_80 {dimension_numbers = #tpu.dot_dimension_numbers<[1], [0], [0], [1], [0, 0, 1, 1], [], []>} : vector<8x32xf32>, vector<32x32xf32>, vector<8x32xf32> -> vector<8x32xf32>
    %244 = vector.broadcast %156 : vector<1x32xf32> to vector<8x32xf32>
    %245 = arith.addf %243, %244 : vector<8x32xf32>
    %246 = arith.addf %152, %245 : vector<8x32xf32>
    %cst_81 = arith.constant dense<0.000000e+00> : vector<8xf32>
    %247 = vector.multi_reduction <add>, %246, %cst_81 [1] : vector<8x32xf32> to vector<8xf32>
    %248 = vector.shape_cast %247 : vector<8xf32> to vector<8x1xf32>
    %cst_82 = arith.constant 3.200000e+01 : f32
    %249 = vector.broadcast %cst_82 : f32 to vector<8x1xf32>
    %250 = arith.divf %248, %249 : vector<8x1xf32>
    %251 = vector.broadcast %250 : vector<8x1xf32> to vector<8x32xf32>
    %252 = arith.subf %246, %251 : vector<8x32xf32>
    %253 = arith.mulf %252, %252 : vector<8x32xf32>
    %cst_83 = arith.constant dense<0.000000e+00> : vector<8xf32>
    %254 = vector.multi_reduction <add>, %253, %cst_83 [1] : vector<8x32xf32> to vector<8xf32>
    %255 = vector.shape_cast %254 : vector<8xf32> to vector<8x1xf32>
    %cst_84 = arith.constant 3.200000e+01 : f32
    %256 = vector.broadcast %cst_84 : f32 to vector<8x1xf32>
    %257 = arith.divf %255, %256 : vector<8x1xf32>
    %258 = vector.broadcast %250 : vector<8x1xf32> to vector<8x32xf32>
    %259 = arith.subf %246, %258 : vector<8x32xf32>
    %cst_85 = arith.constant 9.99999974E-6 : f32
    %260 = vector.broadcast %cst_85 : f32 to vector<8x1xf32>
    %261 = arith.addf %257, %260 : vector<8x1xf32>
    %262 = math.rsqrt %261 : vector<8x1xf32>
    %263 = vector.broadcast %262 : vector<8x1xf32> to vector<8x32xf32>
    %264 = arith.mulf %259, %263 : vector<8x32xf32>
    %265 = vector.broadcast %159 : vector<1x32xf32> to vector<8x32xf32>
    %266 = arith.mulf %264, %265 : vector<8x32xf32>
    %267 = vector.broadcast %160 : vector<1x32xf32> to vector<8x32xf32>
    %268 = arith.addf %266, %267 : vector<8x32xf32>
    %c1_86 = arith.constant 1 : index
    %c0_87 = arith.constant 0 : index
    %c0_88 = arith.constant 0 : index
    %269 = vector.load %arg4[%c1_86, %c0_87, %c0_88] : memref<2x32x64xf32, #tpu.memory_space<vmem>>, vector<1x32x64xf32>
    %270 = vector.shape_cast %269 : vector<1x32x64xf32> to vector<32x64xf32>
    %cst_89 = arith.constant dense<0.000000e+00> : vector<8x64xf32>
    %271 = tpu.matmul %268, %270, %cst_89 {dimension_numbers = #tpu.dot_dimension_numbers<[1], [0], [0], [1], [0, 0, 1, 1], [], []>} : vector<8x32xf32>, vector<32x64xf32>, vector<8x64xf32> -> vector<8x64xf32>
    %272 = vector.broadcast %157 : vector<1x64xf32> to vector<8x64xf32>
    %273 = arith.addf %271, %272 : vector<8x64xf32>
    %cst_90 = arith.constant 0.000000e+00 : f32
    %274 = vector.broadcast %cst_90 : f32 to vector<8x64xf32>
    %275 = arith.maximumf %273, %274 : vector<8x64xf32>
    %c1_91 = arith.constant 1 : index
    %c0_92 = arith.constant 0 : index
    %c0_93 = arith.constant 0 : index
    %276 = vector.load %arg5[%c1_91, %c0_92, %c0_93] : memref<2x64x32xf32, #tpu.memory_space<vmem>>, vector<1x64x32xf32>
    %277 = vector.shape_cast %276 : vector<1x64x32xf32> to vector<64x32xf32>
    %cst_94 = arith.constant dense<0.000000e+00> : vector<8x32xf32>
    %278 = tpu.matmul %275, %277, %cst_94 {dimension_numbers = #tpu.dot_dimension_numbers<[1], [0], [0], [1], [0, 0, 1, 1], [], []>} : vector<8x64xf32>, vector<64x32xf32>, vector<8x32xf32> -> vector<8x32xf32>
    %279 = vector.broadcast %158 : vector<1x32xf32> to vector<8x32xf32>
    %280 = arith.addf %278, %279 : vector<8x32xf32>
    %281 = arith.addf %268, %280 : vector<8x32xf32>
    %cst_95 = arith.constant dense<0.000000e+00> : vector<8xf32>
    %282 = vector.multi_reduction <add>, %281, %cst_95 [1] : vector<8x32xf32> to vector<8xf32>
    %283 = vector.shape_cast %282 : vector<8xf32> to vector<8x1xf32>
    %cst_96 = arith.constant 3.200000e+01 : f32
    %284 = vector.broadcast %cst_96 : f32 to vector<8x1xf32>
    %285 = arith.divf %283, %284 : vector<8x1xf32>
    %286 = vector.broadcast %285 : vector<8x1xf32> to vector<8x32xf32>
    %287 = arith.subf %281, %286 : vector<8x32xf32>
    %288 = arith.mulf %287, %287 : vector<8x32xf32>
    %cst_97 = arith.constant dense<0.000000e+00> : vector<8xf32>
    %289 = vector.multi_reduction <add>, %288, %cst_97 [1] : vector<8x32xf32> to vector<8xf32>
    %290 = vector.shape_cast %289 : vector<8xf32> to vector<8x1xf32>
    %cst_98 = arith.constant 3.200000e+01 : f32
    %291 = vector.broadcast %cst_98 : f32 to vector<8x1xf32>
    %292 = arith.divf %290, %291 : vector<8x1xf32>
    %293 = vector.broadcast %285 : vector<8x1xf32> to vector<8x32xf32>
    %294 = arith.subf %281, %293 : vector<8x32xf32>
    %cst_99 = arith.constant 9.99999974E-6 : f32
    %295 = vector.broadcast %cst_99 : f32 to vector<8x1xf32>
    %296 = arith.addf %292, %295 : vector<8x1xf32>
    %297 = math.rsqrt %296 : vector<8x1xf32>
    %298 = vector.broadcast %297 : vector<8x1xf32> to vector<8x32xf32>
    %299 = arith.mulf %294, %298 : vector<8x32xf32>
    %300 = vector.broadcast %161 : vector<1x32xf32> to vector<8x32xf32>
    %301 = arith.mulf %299, %300 : vector<8x32xf32>
    %302 = vector.broadcast %162 : vector<1x32xf32> to vector<8x32xf32>
    %303 = arith.addf %301, %302 : vector<8x32xf32>
    %c0_100 = arith.constant 0 : index
    %c0_101 = arith.constant 0 : index
    %304 = vector.load %arg7[%c0_100, %c0_101] : memref<2x32xf32, #tpu.memory_space<vmem>>, vector<2x32xf32>
    %305 = vector.extract_strided_slice %304 {offsets = [0, 0], sizes = [1, 32], strides = [1, 1]} : vector<2x32xf32> to vector<1x32xf32>
    %306 = vector.extract_strided_slice %304 {offsets = [1, 0], sizes = [1, 32], strides = [1, 1]} : vector<2x32xf32> to vector<1x32xf32>
    %cst_102 = arith.constant dense<0.000000e+00> : vector<8xf32>
    %307 = vector.multi_reduction <add>, %303, %cst_102 [1] : vector<8x32xf32> to vector<8xf32>
    %308 = vector.shape_cast %307 : vector<8xf32> to vector<8x1xf32>
    %cst_103 = arith.constant 3.200000e+01 : f32
    %309 = vector.broadcast %cst_103 : f32 to vector<8x1xf32>
    %310 = arith.divf %308, %309 : vector<8x1xf32>
    %311 = vector.broadcast %310 : vector<8x1xf32> to vector<8x32xf32>
    %312 = arith.subf %303, %311 : vector<8x32xf32>
    %313 = arith.mulf %312, %312 : vector<8x32xf32>
    %cst_104 = arith.constant dense<0.000000e+00> : vector<8xf32>
    %314 = vector.multi_reduction <add>, %313, %cst_104 [1] : vector<8x32xf32> to vector<8xf32>
    %315 = vector.shape_cast %314 : vector<8xf32> to vector<8x1xf32>
    %cst_105 = arith.constant 3.200000e+01 : f32
    %316 = vector.broadcast %cst_105 : f32 to vector<8x1xf32>
    %317 = arith.divf %315, %316 : vector<8x1xf32>
    %318 = vector.broadcast %310 : vector<8x1xf32> to vector<8x32xf32>
    %319 = arith.subf %303, %318 : vector<8x32xf32>
    %cst_106 = arith.constant 9.99999974E-6 : f32
    %320 = vector.broadcast %cst_106 : f32 to vector<8x1xf32>
    %321 = arith.addf %317, %320 : vector<8x1xf32>
    %322 = math.rsqrt %321 : vector<8x1xf32>
    %323 = vector.broadcast %322 : vector<8x1xf32> to vector<8x32xf32>
    %324 = arith.mulf %319, %323 : vector<8x32xf32>
    %325 = vector.broadcast %305 : vector<1x32xf32> to vector<8x32xf32>
    %326 = arith.mulf %324, %325 : vector<8x32xf32>
    %327 = vector.broadcast %306 : vector<1x32xf32> to vector<8x32xf32>
    %328 = arith.addf %326, %327 : vector<8x32xf32>
    %cst_107 = arith.constant 0.000000e+00 : f32
    %329 = vector.broadcast %cst_107 : f32 to vector<8x32xf32>
    %330 = tpu.concatenate %88, %239, %328, %329 in 1 : vector<8x32xf32>, vector<8x32xf32>, vector<8x32xf32>, vector<8x32xf32> -> vector<8x128xf32>
    %c0_108 = arith.constant 0 : index
    %c0_109 = arith.constant 0 : index
    %c0_110 = arith.constant 0 : index
    %331 = vector.load %arg8[%c0_108, %c0_109, %c0_110] : memref<1x8x128xf32, #tpu.memory_space<vmem>>, vector<1x8x128xf32>
    %332 = vector.shape_cast %331 : vector<1x8x128xf32> to vector<8x128xf32>
    %333 = vector.shape_cast %330 : vector<8x128xf32> to vector<1x8x128xf32>
    tpu.vector_store %arg8[%c0_108, %c0_109, %c0_110], %333 {strides = array<i32>} : memref<1x8x128xf32, #tpu.memory_space<vmem>>, vector<1x8x128xf32>,
    return
  }
  func.func @transform_0(%arg0: i32) -> (i32, i32, i32) {
    %c0_i32 = arith.constant 0 : i32
    %c0_i32_0 = arith.constant 0 : i32
    %c0_i32_1 = arith.constant 0 : i32
    return %arg0, %c0_i32, %c0_i32_0 : i32, i32, i32
  }
  func.func @transform_1(%arg0: i32) -> (i32, i32, i32) {
    %c0_i32 = arith.constant 0 : i32
    %c0_i32_0 = arith.constant 0 : i32
    %c0_i32_1 = arith.constant 0 : i32
    %c0_i32_2 = arith.constant 0 : i32
    return %c0_i32, %c0_i32_0, %c0_i32_1 : i32, i32, i32
  }
  func.func @transform_2(%arg0: i32) -> (i32, i32, i32) {
    %c0_i32 = arith.constant 0 : i32
    %c0_i32_0 = arith.constant 0 : i32
    %c0_i32_1 = arith.constant 0 : i32
    %c0_i32_2 = arith.constant 0 : i32
    return %c0_i32, %c0_i32_0, %c0_i32_1 : i32, i32, i32
  }
  func.func @transform_3(%arg0: i32) -> (i32, i32, i32) {
    %c0_i32 = arith.constant 0 : i32
    %c0_i32_0 = arith.constant 0 : i32
    %c0_i32_1 = arith.constant 0 : i32
    %c0_i32_2 = arith.constant 0 : i32
    return %c0_i32, %c0_i32_0, %c0_i32_1 : i32, i32, i32
  }
  func.func @transform_4(%arg0: i32) -> (i32, i32, i32) {
    %c0_i32 = arith.constant 0 : i32
    %c0_i32_0 = arith.constant 0 : i32
    %c0_i32_1 = arith.constant 0 : i32
    %c0_i32_2 = arith.constant 0 : i32
    return %c0_i32, %c0_i32_0, %c0_i32_1 : i32, i32, i32
  }
  func.func @transform_5(%arg0: i32) -> (i32, i32, i32) {
    %c0_i32 = arith.constant 0 : i32
    %c0_i32_0 = arith.constant 0 : i32
    %c0_i32_1 = arith.constant 0 : i32
    %c0_i32_2 = arith.constant 0 : i32
    return %c0_i32, %c0_i32_0, %c0_i32_1 : i32, i32, i32
  }
  func.func @transform_6(%arg0: i32) -> (i32, i32) {
    %c0_i32 = arith.constant 0 : i32
    %c0_i32_0 = arith.constant 0 : i32
    %c0_i32_1 = arith.constant 0 : i32
    return %c0_i32, %c0_i32_0 : i32, i32
  }
  func.func @transform_7(%arg0: i32) -> (i32, i32, i32) {
    %c0_i32 = arith.constant 0 : i32
    %c0_i32_0 = arith.constant 0 : i32
    %c0_i32_1 = arith.constant 0 : i32
    return %arg0, %c0_i32, %c0_i32_0 : i32, i32, i32
  }
}

</mosaic_0001>

<llo_original>
// kernel: tpu_custom_call.1
$region0: #{tpu_custom_call.1}
  #allocation0 [shape = 'u32[]', space=smem, size = 0x4, offset = 0x4, fixed_abs, tag = 'smem constant byte address 0x4 - core index']
  #allocation1 [shape = 'u32[72,128]{1,0:T(1,128)}', space=vmem, size = 0x9000, scoped, tag = 'internal scratch']
  %s0 = inlined_call_operand.hbm [shape: f32[2,8,32], index: 0, kind: input, shape index: {}]
  %s1 = inlined_call_operand.vmem [shape: f32[2,32,96], index: 1, kind: input, shape index: {}]
  %s2 = inlined_call_operand.vmem [shape: f32[2,32,32], index: 2, kind: input, shape index: {}]
  %s3 = inlined_call_operand.vmem [shape: f32[2,32,64], index: 3, kind: input, shape index: {}]
  %s4 = inlined_call_operand.vmem [shape: f32[2,64,32], index: 4, kind: input, shape index: {}]
  %s5 = inlined_call_operand.hbm [shape: f32[2,8,128], index: 5, kind: input, shape index: {}]
  %s6 = inlined_call_operand.vmem [shape: f32[2,32], index: 6, kind: input, shape index: {}]
  %s7 = inlined_call_operand.hbm [shape: f32[2,8,128], index: 7, kind: output, shape index: {}]
  %s8 = sld [smem:[#allocation0]]
  $region69: #{tpu_custom_call.1} parent=0
    _
  %s10 = ssub.s32 1, %s8
  %s11 = scalar_select 0, %s10, %s8
  $region1: #{tpu_custom_call.1} parent=0
    #allocation2 [shape = 'u8[8192]{0}', space=vmem, size = 0x2000, scoped, tag = 'input window, operand 0']
    #allocation3 [shape = 's32[2]{0}', space=sflag, size = 0x8, scoped, tag = 'scoped memory for tpu_custom_call.1']
    #allocation4 [shape = 's32[2]{0}', space=sflag, size = 0x8, scoped, tag = 'scoped memory for tpu_custom_call.1']
    #allocation5 [shape = 'u8[8192]{0}', space=vmem, size = 0x2000, scoped, tag = 'input window, operand 5, single buffered']
    #allocation6 [shape = 's32[1]{0}', space=sflag, size = 0x4, scoped, tag = 'scoped memory for tpu_custom_call.1']
    #allocation7 [shape = 'u8[8192]{0}', space=vmem, size = 0x2000, scoped, tag = 'output window, operand 0']
    %12 = vsyncpa [#allocation3], 0
    %s13 = scalar_lea.sflag [#allocation3], 1
    %14 = vsyncpa %s13, 0
    %15 = vsyncpa [#allocation6], 0
    %16 = vsyncpa [#allocation4], 0
    %s17 = scalar_lea.sflag [#allocation4], 1
    %18 = vsyncpa %s17, 0
    loop: start=0, step=1, limit=4
    $region2: #{tpu_custom_call.1} parent=1 // loop_pre_header
      _
    $region3: #{tpu_custom_call.1} parent=1 // loop_header
      %s20 = sphi 0, %s24
      %p21 = scmp.ge.s32.totalorder %s20, 4
      %s30 = sphi 0, %s32
      %s33 = sphi 0, %s30
      %s34 = sphi 0, %s33
      %s50 = sphi 0, %s34
      %s54 = sphi 0, %s54
      %s56 = sphi 0, %s54
      %s57 = sphi 0, %s56
      %s71 = sphi 0, %s57
      %s75 = sphi 0, %s75
      %s77 = sphi 0, %s75
      %s78 = sphi 0, %s77
      %s92 = sphi 0, %s78
      %s96 = sphi 0, %s96
      %s98 = sphi 0, %s96
      %s99 = sphi 0, %s98
      %s113 = sphi 0, %s99
      %s117 = sphi 0, %s117
      %s119 = sphi 0, %s117
      %s120 = sphi 0, %s119
      %s134 = sphi 0, %s120
      %s138 = sphi 0, %s138
      %s140 = sphi 0, %s138
      %s141 = sphi 0, %s140
      %s155 = sphi 0, %s141
      %s159 = sphi 0, %s159
      %s161 = sphi 0, %s159
      %s162 = sphi 0, %s161
      %s176 = sphi 0, %s162
      %s182 = sphi 0, %s184
      %s185 = sphi 0, %s182
      %s186 = sphi 0, %s185
      %s202 = sphi 0, %s186
    $region4: #{tpu_custom_call.1} parent=1 // loop_header_branch
      %23 = sbr.rel (%p21) target = $region8
    $region5: #{tpu_custom_call.1} parent=1 // loop_body
      %s25 = ssub.s32 %s20, 1
      %s26 = ssub.s32 %s20, 2
      %s27 = sadd.s32 %s20, 1
      %s28 = ssub.s32 %s20, %s27
      %p29 = scmp.eq.s32.totalorder %s28, 0
      %s31 = sadd.s32 %s30, 1
      %s32 = scalar_select %p29, %s30, %s31
      %p35 = pneg %p29
      %p36 = scmp.eq.s32.totalorder %s20, 1
      %p37 = por %p35, %p36
      %p38 = scmp.ne.s32.totalorder %s30, %s33
      %p39 = scmp.eq.s32.totalorder %s20, 0
      %p40 = por %p38, %p39
      %p41 = scmp.ne.s32.totalorder %s30, %s33
      %p42 = scmp.eq.s32.totalorder %s25, 1
      %p43 = por %p41, %p42
      %p44 = scmp.ne.s32.totalorder %s33, %s34
      %p45 = scmp.eq.s32.totalorder %s25, 0
      %p46 = por %p44, %p45
      %p47 = scmp.ne.s32.totalorder %s33, %s34
      %p48 = scmp.eq.s32.totalorder %s26, 1
      %p49 = por %p47, %p48
      %p51 = scmp.ne.s32.totalorder %s34, %s50
      %p52 = scmp.eq.s32.totalorder %s26, 0
      %p53 = por %p51, %p52
      %s55 = sadd.s32 %s54, 1
      %p58 = scmp.eq.s32.totalorder %s20, 1
      %p59 = scmp.ne.s32.totalorder %s54, %s56
      %p60 = scmp.eq.s32.totalorder %s20, 0
      %p61 = por %p59, %p60
      %p62 = scmp.ne.s32.totalorder %s54, %s56
      %p63 = scmp.eq.s32.totalorder %s25, 1
      %p64 = por %p62, %p63
      %p65 = scmp.ne.s32.totalorder %s56, %s57
      %p66 = scmp.eq.s32.totalorder %s25, 0
      %p67 = por %p65, %p66
      %p68 = scmp.ne.s32.totalorder %s56, %s57
      %p69 = scmp.eq.s32.totalorder %s26, 1
      %p70 = por %p68, %p69
      %p72 = scmp.ne.s32.totalorder %s57, %s71
      %p73 = scmp.eq.s32.totalorder %s26, 0
      %p74 = por %p72, %p73
      %s76 = sadd.s32 %s75, 1
      %p79 = scmp.eq.s32.totalorder %s20, 1
      %p80 = scmp.ne.s32.totalorder %s75, %s77
      %p81 = scmp.eq.s32.totalorder %s20, 0
      %p82 = por %p80, %p81
      %p83 = scmp.ne.s32.totalorder %s75, %s77
      %p84 = scmp.eq.s32.totalorder %s25, 1
      %p85 = por %p83, %p84
      %p86 = scmp.ne.s32.totalorder %s77, %s78
      %p87 = scmp.eq.s32.totalorder %s25, 0
      %p88 = por %p86, %p87
      %p89 = scmp.ne.s32.totalorder %s77, %s78
      %p90 = scmp.eq.s32.totalorder %s26, 1
      %p91 = por %p89, %p90
      %p93 = scmp.ne.s32.totalorder %s78, %s92
      %p94 = scmp.eq.s32.totalorder %s26, 0
      %p95 = por %p93, %p94
      %s97 = sadd.s32 %s96, 1
      %p100 = scmp.eq.s32.totalorder %s20, 1
      %p101 = scmp.ne.s32.totalorder %s96, %s98
      %p102 = scmp.eq.s32.totalorder %s20, 0
      %p103 = por %p101, %p102
      %p104 = scmp.ne.s32.totalorder %s96, %s98
      %p105 = scmp.eq.s32.totalorder %s25, 1
      %p106 = por %p104, %p105
      %p107 = scmp.ne.s32.totalorder %s98, %s99
      %p108 = scmp.eq.s32.totalorder %s25, 0
      %p109 = por %p107, %p108
      %p110 = scmp.ne.s32.totalorder %s98, %s99
      %p111 = scmp.eq.s32.totalorder %s26, 1
      %p112 = por %p110, %p111
      %p114 = scmp.ne.s32.totalorder %s99, %s113
      %p115 = scmp.eq.s32.totalorder %s26, 0
      %p116 = por %p114, %p115
      %s118 = sadd.s32 %s117, 1
      %p121 = scmp.eq.s32.totalorder %s20, 1
      %p122 = scmp.ne.s32.totalorder %s117, %s119
      %p123 = scmp.eq.s32.totalorder %s20, 0
      %p124 = por %p122, %p123
      %p125 = scmp.ne.s32.totalorder %s117, %s119
      %p126 = scmp.eq.s32.totalorder %s25, 1
      %p127 = por %p125, %p126
      %p128 = scmp.ne.s32.totalorder %s119, %s120
      %p129 = scmp.eq.s32.totalorder %s25, 0
      %p130 = por %p128, %p129
      %p131 = scmp.ne.s32.totalorder %s119, %s120
      %p132 = scmp.eq.s32.totalorder %s26, 1
      %p133 = por %p131, %p132
      %p135 = scmp.ne.s32.totalorder %s120, %s134
      %p136 = scmp.eq.s32.totalorder %s26, 0
      %p137 = por %p135, %p136
      %s139 = sadd.s32 %s138, 1
      %p142 = scmp.eq.s32.totalorder %s20, 1
      %p143 = scmp.ne.s32.totalorder %s138, %s140
      %p144 = scmp.eq.s32.totalorder %s20, 0
      %p145 = por %p143, %p144
      %p146 = scmp.ne.s32.totalorder %s138, %s140
      %p147 = scmp.eq.s32.totalorder %s25, 1
      %p148 = por %p146, %p147
      %p149 = scmp.ne.s32.totalorder %s140, %s141
      %p150 = scmp.eq.s32.totalorder %s25, 0
      %p151 = por %p149, %p150
      %p152 = scmp.ne.s32.totalorder %s140, %s141
      %p153 = scmp.eq.s32.totalorder %s26, 1
      %p154 = por %p152, %p153
      %p156 = scmp.ne.s32.totalorder %s141, %s155
      %p157 = scmp.eq.s32.totalorder %s26, 0
      %p158 = por %p156, %p157
      %s160 = sadd.s32 %s159, 1
      %p163 = scmp.eq.s32.totalorder %s20, 1
      %p164 = scmp.ne.s32.totalorder %s159, %s161
      %p165 = scmp.eq.s32.totalorder %s20, 0
      %p166 = por %p164, %p165
      %p167 = scmp.ne.s32.totalorder %s159, %s161
      %p168 = scmp.eq.s32.totalorder %s25, 1
      %p169 = por %p167, %p168
      %p170 = scmp.ne.s32.totalorder %s161, %s162
      %p171 = scmp.eq.s32.totalorder %s25, 0
      %p172 = por %p170, %p171
      %p173 = scmp.ne.s32.totalorder %s161, %s162
      %p174 = scmp.eq.s32.totalorder %s26, 1
      %p175 = por %p173, %p174
      %p177 = scmp.ne.s32.totalorder %s162, %s176
      %p178 = scmp.eq.s32.totalorder %s26, 0
      %p179 = por %p177, %p178
      %s180 = ssub.s32 %s20, %s27
      %p181 = scmp.eq.s32.totalorder %s180, 0
      %s183 = sadd.s32 %s182, 1
      %s184 = scalar_select %p181, %s182, %s183
      %p187 = pneg %p181
      %p188 = scmp.eq.s32.totalorder %s20, 1
      %p189 = por %p187, %p188
      %p190 = scmp.ne.s32.totalorder %s182, %s185
      %p191 = scmp.eq.s32.totalorder %s20, 0
      %p192 = por %p190, %p191
      %p193 = scmp.ne.s32.totalorder %s182, %s185
      %p194 = scmp.eq.s32.totalorder %s25, 1
      %p195 = por %p193, %p194
      %p196 = scmp.ne.s32.totalorder %s185, %s186
      %p197 = scmp.eq.s32.totalorder %s25, 0
      %p198 = por %p196, %p197
      %p199 = scmp.ne.s32.totalorder %s185, %s186
      %p200 = scmp.eq.s32.totalorder %s26, 1
      %p201 = por %p199, %p200
      %p203 = scmp.ne.s32.totalorder %s186, %s202
      %p204 = scmp.eq.s32.totalorder %s26, 0
      %p205 = por %p203, %p204
      %p206 = scmp.le.s32.totalorder 1, %s20
      %p207 = scmp.lt.s32.totalorder %s20, 3
      %p208 = pnand %p206, %p207
      %p209 = pneg %p208
      // Predicated region
      $region9: #{tpu_custom_call.1} parent=5 // pred_check
        _
      $region10: #{tpu_custom_call.1} parent=5 // pred_check_branch
        %211 = sbr.rel (%p208) target = $region12
      $region11: #{tpu_custom_call.1} parent=5 // pred_region
        %s212 = ssub.s32 %s20, 1
        // Predicated region
        $region13: #{tpu_custom_call.1} parent=11 // pred_check
          %p213 = pneg %p67
        $region14: #{tpu_custom_call.1} parent=11 // pred_check_branch
          %215 = sbr.rel (%p213) target = $region16
        $region15: #{tpu_custom_call.1} parent=11 // pred_region
          _
        $region16: #{tpu_custom_call.1} parent=11 // pred_fallthru
          _
        // Predicated region
        $region17: #{tpu_custom_call.1} parent=11 // pred_check
          %p216 = pneg %p88
        $region18: #{tpu_custom_call.1} parent=11 // pred_check_branch
          %218 = sbr.rel (%p216) target = $region20
        $region19: #{tpu_custom_call.1} parent=11 // pred_region
          _
        $region20: #{tpu_custom_call.1} parent=11 // pred_fallthru
          _
        // Predicated region
        $region21: #{tpu_custom_call.1} parent=11 // pred_check
          %p219 = pneg %p109
        $region22: #{tpu_custom_call.1} parent=11 // pred_check_branch
          %221 = sbr.rel (%p219) target = $region24
        $region23: #{tpu_custom_call.1} parent=11 // pred_region
          _
        $region24: #{tpu_custom_call.1} parent=11 // pred_fallthru
          _
        // Predicated region
        $region25: #{tpu_custom_call.1} parent=11 // pred_check
          %p222 = pneg %p130
        $region26: #{tpu_custom_call.1} parent=11 // pred_check_branch
          %224 = sbr.rel (%p222) target = $region28
        $region27: #{tpu_custom_call.1} parent=11 // pred_region
          _
        $region28: #{tpu_custom_call.1} parent=11 // pred_fallthru
          _
        // Predicated region
        $region29: #{tpu_custom_call.1} parent=11 // pred_check
          %p225 = pneg %p151
        $region30: #{tpu_custom_call.1} parent=11 // pred_check_branch
          %227 = sbr.rel (%p225) target = $region32
        $region31: #{tpu_custom_call.1} parent=11 // pred_region
          %229 = vsyncadd [#allocation6], 0
          %s230 = sshll.u32 %s5, 4
          %s231 = int_to_ptr.hbm [resolvable:$true] %s230
          %s232 = sshll.u32 [#allocation5], 4
          %s233 = int_to_ptr.vmem [resolvable:$true] %s232
          %238 = dma.hbm_to_vmem [thread:$0]  %s231, 256, %s233, [#allocation6], 128, 128, 8
        $region32: #{tpu_custom_call.1} parent=11 // pred_fallthru
          _
        // Predicated region
        $region33: #{tpu_custom_call.1} parent=11 // pred_check
          %p239 = pneg %p172
        $region34: #{tpu_custom_call.1} parent=11 // pred_check_branch
          %241 = sbr.rel (%p239) target = $region36
        $region35: #{tpu_custom_call.1} parent=11 // pred_region
          _
        $region36: #{tpu_custom_call.1} parent=11 // pred_fallthru
          _
      $region12: #{tpu_custom_call.1} parent=5 // pred_fallthru
        _
      %p242 = scmp.lt.s32.totalorder %s20, 2
      // Predicated region
      $region37: #{tpu_custom_call.1} parent=5 // pred_check
        %p243 = pneg %p242
      $region38: #{tpu_custom_call.1} parent=5 // pred_check_branch
        %245 = sbr.rel (%p243) target = $region40
      $region39: #{tpu_custom_call.1} parent=5 // pred_region
        // Predicated region
        $region41: #{tpu_custom_call.1} parent=39 // pred_check
          %p246 = pneg %p40
        $region42: #{tpu_custom_call.1} parent=39 // pred_check_branch
          %248 = sbr.rel (%p246) target = $region44
        $region43: #{tpu_custom_call.1} parent=39 // pred_region
          %s249 = sand.u32 %s30, 1
          %s250 = scalar_lea.sflag [#allocation3], %s249
          %s251 = sand.u32 %s30, 1
          %s252 = smul.addr %s251, 8
          %s253 = scalar_lea.vmem [#allocation2], %s252
          %255 = vsyncadd %s250, 0
          %s256 = smul.addr %s20, 8
          %s257 = scalar_lea.hbm %s0, %s256
          %s259 = sshll.u32 %s257, 4
          %s260 = int_to_ptr.hbm [resolvable:$true] %s259
          %s261 = sshll.u32 %s253, 4
          %s262 = int_to_ptr.vmem [resolvable:$true] %s261
          %264 = dma.hbm_to_vmem [thread:$0]  %s260, 128, %s262, %s250
        $region44: #{tpu_custom_call.1} parent=39 // pred_fallthru
          _
      $region40: #{tpu_custom_call.1} parent=5 // pred_fallthru
        _
      %p265 = scmp.le.s32.totalorder 1, %s20
      %p266 = scmp.lt.s32.totalorder %s20, 3
      %p267 = pnand %p265, %p266
      %p268 = pneg %p267
      // Predicated region
      $region45: #{tpu_custom_call.1} parent=5 // pred_check
        _
      $region46: #{tpu_custom_call.1} parent=5 // pred_check_branch
        %270 = sbr.rel (%p267) target = $region48
      $region47: #{tpu_custom_call.1} parent=5 // pred_region
        %s271 = ssub.s32 %s20, 1
        %s272 = sand.u32 %s33, 1
        %s273 = scalar_lea.sflag [#allocation3], %s272
        %s274 = sand.u32 %s33, 1
        %s275 = smul.addr %s274, 8
        %s276 = scalar_lea.vmem [#allocation2], %s275
        // Predicated region
        $region49: #{tpu_custom_call.1} parent=47 // pred_check
          %p277 = pneg %p46
        $region50: #{tpu_custom_call.1} parent=47 // pred_check_branch
          %279 = sbr.rel (%p277) target = $region52
        $region51: #{tpu_custom_call.1} parent=47 // pred_region
          %281 = dma.done %s273, 128
        $region52: #{tpu_custom_call.1} parent=47 // pred_fallthru
          _
        // Predicated region
        $region53: #{tpu_custom_call.1} parent=47 // pred_check
          %p282 = pneg %p151
        $region54: #{tpu_custom_call.1} parent=47 // pred_check_branch
          %284 = sbr.rel (%p282) target = $region56
        $region55: #{tpu_custom_call.1} parent=47 // pred_region
          %286 = dma.done [#allocation6], 256
        $region56: #{tpu_custom_call.1} parent=47 // pred_fallthru
          _
        %s287 = sand.u32 %s33, 1
        %s288 = scalar_lea.sflag [#allocation3], %s287
        %s289 = sand.u32 %s33, 1
        %s290 = smul.addr %s289, 8
        %s291 = scalar_lea.vmem [#allocation2], %s290
        %p292 = pneg %p46
        %p293 = pneg %p43
        %p294 = pneg %p67
        %p295 = pneg %p64
        %p296 = pneg %p88
        %p297 = pneg %p85
        %p298 = pneg %p109
        %p299 = pneg %p106
        %p300 = pneg %p130
        %p301 = pneg %p127
        %p302 = pneg %p151
        %p303 = pneg %p148
        %p304 = pneg %p172
        %p305 = pneg %p169
        %p306 = pneg %p198
        %p307 = pneg %p195
        %s308 = sand.u32 %s185, 1
        %s309 = scalar_lea.sflag [#allocation4], %s308
        %s310 = sand.u32 %s185, 1
        %s311 = smul.addr %s310, 8
        %s312 = scalar_lea.vmem [#allocation7], %s311
        %v313 = vld [vmem:[%s276] sm:$0xff]
        %v314 = vld [vmem:[#allocation5] sm:$0xff]
        %v315 = vld [vmem:[%s1] sm:$0xff]
        %v316 = vld [vmem:[%s1 + $0x8] sm:$0xff]
        %v317 = vld [vmem:[%s1 + $0x10] sm:$0xff]
        %v318 = vld [vmem:[%s1 + $0x18] sm:$0xff]
        %v319 = vperm.slane %v314, 0
        %vm320 = vcmask 261120
        %v322 = vsel %vm320, %v313, 0
        %324 = vmatpush.msra.mxu0 0.0
        %325 = vmatpush.msra.mxu0 0.0
        %326 = vmatpush.msra.mxu0 0.0
        %327 = vmatpush.msra.mxu0 0.0
        %328 = vmatpush.msra.mxu0 0.0
        %329 = vmatpush.msra.mxu0 0.0
        %330 = vmatpush.msra.mxu0 0.0
        %331 = vmatpush.msra.mxu0 0.0
        %332 = vmatpush.msra.mxu0 0.0
        %333 = vmatpush.msra.mxu0 0.0
        %334 = vmatpush.msra.mxu0 0.0
        %335 = vmatpush.msra.mxu0 0.0
        %336 = vmatpush.msra.mxu0 %v318
        %337 = vmatpush.msra.mxu0 %v317
        %338 = vmatpush.msra.mxu0 %v316
        %339 = vmatpush.msra.mxu0 %v315
        %340 = vmatmul.f32.gmra.mxu0 %v322
        %v341 = vpop.f32.mrf.mxu0
        %v342 = vadd.f32 %v319, %v341
        %343 = vdwg.mxu0
        %345 = vrot.lane.b32.xlu0 %v342, 96
        %v346 = vpop.permute.xlu0 %345
        %vm347 = vcmask 64512
        %v348 = vsel %vm347, %v342, 0
        %v350 = vsel %vm347, %v346, 0
        %352 = vmatpush.xpose.msra.mxu0 0.0
        %353 = vmatpush.xpose.msra.mxu0 0.0
        %354 = vmatpush.xpose.msra.mxu0 0.0
        %355 = vmatpush.xpose.msra.mxu0 0.0
        %356 = vmatpush.xpose.msra.mxu0 0.0
        %357 = vmatpush.xpose.msra.mxu0 0.0
        %358 = vmatpush.xpose.msra.mxu0 0.0
        %359 = vmatpush.xpose.msra.mxu0 0.0
        %360 = vmatpush.xpose.msra.mxu0 0.0
        %361 = vmatpush.xpose.msra.mxu0 0.0
        %362 = vmatpush.xpose.msra.mxu0 0.0
        %363 = vmatpush.xpose.msra.mxu0 0.0
        %364 = vmatpush.xpose.msra.mxu0 0.0
        %365 = vmatpush.xpose.msra.mxu0 0.0
        %366 = vmatpush.xpose.msra.mxu0 0.0
        %367 = vmatpush.xpose.msra.mxu0 %v350
        %368 = vmatmul.f32.gmra.mxu0 %v348
        %v369 = vpop.f32.mrf.mxu0
        %v370 = vadd.f32 0.0, %v369
        %371 = vdwg.mxu0
        %v372 = vmul.f32 %v370, 0.35355338
        %v373 = vsel %vm347, %v372, -inf
        %374 = vmax.xlane.f32.xlu0 %v373
        %v375 = vpop.xlane.xlu0 %374
        %v376 = vsub.f32 %v372, %v375
        %v377 = vmul.f32 %v376, 1.442695
        %v378 = vpow.pop %v377
        %v379 = vsel %vm347, %v378, 0.0
        %380 = vadd.xlane.f32.xlu0 %v379
        %v381 = vpop.xlane.xlu0 %380
        %v382 = vrcp.pop %v381
        %v383 = vmul.f32 %v378, %v382
        %384 = vrot.lane.b32.xlu0 %v342, 64
        %v385 = vpop.permute.xlu0 %384
        %v388 = vsel %vm347, %v383, 0
        %390 = vmatpush.msra.mxu0 0.0
        %391 = vmatpush.msra.mxu0 0.0
        %392 = vmatpush.msra.mxu0 0.0
        %393 = vmatpush.msra.mxu0 0.0
        %394 = vmatpush.msra.mxu0 0.0
        %395 = vmatpush.msra.mxu0 0.0
        %396 = vmatpush.msra.mxu0 0.0
        %397 = vmatpush.msra.mxu0 0.0
        %398 = vmatpush.msra.mxu0 0.0
        %399 = vmatpush.msra.mxu0 0.0
        %400 = vmatpush.msra.mxu0 0.0
        %401 = vmatpush.msra.mxu0 0.0
        %402 = vmatpush.msra.mxu0 0.0
        %403 = vmatpush.msra.mxu0 0.0
        %404 = vmatpush.msra.mxu0 0.0
        %405 = vmatpush.msra.mxu0 %v385
        %406 = vmatmul.f32.gmra.mxu0 %v388
        %v407 = vpop.f32.mrf.mxu0
        %v408 = vadd.f32 0.0, %v407
        %409 = vdwg.mxu0
        %410 = vrot.lane.b32.xlu0 %v342, 120
        %v411 = vpop.permute.xlu0 %410
        %412 = vrot.lane.b32.xlu0 %v342, 88
        %v413 = vpop.permute.xlu0 %412
        %v414 = vsel %vm347, %v411, 0
        %v416 = vsel %vm347, %v413, 0
        %418 = vmatpush.xpose.msra.mxu0 0.0
        %419 = vmatpush.xpose.msra.mxu0 0.0
        %420 = vmatpush.xpose.msra.mxu0 0.0
        %421 = vmatpush.xpose.msra.mxu0 0.0
        %422 = vmatpush.xpose.msra.mxu0 0.0
        %423 = vmatpush.xpose.msra.mxu0 0.0
        %424 = vmatpush.xpose.msra.mxu0 0.0
        %425 = vmatpush.xpose.msra.mxu0 0.0
        %426 = vmatpush.xpose.msra.mxu0 0.0
        %427 = vmatpush.xpose.msra.mxu0 0.0
        %428 = vmatpush.xpose.msra.mxu0 0.0
        %429 = vmatpush.xpose.msra.mxu0 0.0
        %430 = vmatpush.xpose.msra.mxu0 0.0
        %431 = vmatpush.xpose.msra.mxu0 0.0
        %432 = vmatpush.xpose.msra.mxu0 0.0
        %433 = vmatpush.xpose.msra.mxu0 %v416
        %434 = vmatmul.f32.gmra.mxu0 %v414
        %v435 = vpop.f32.mrf.mxu0
        %v436 = vadd.f32 0.0, %v435
        %437 = vdwg.mxu0
        %v438 = vmul.f32 %v436, 0.35355338
        %v439 = vsel %vm347, %v438, -inf
        %440 = vmax.xlane.f32.xlu0 %v439
        %v441 = vpop.xlane.xlu0 %440
        %v442 = vsub.f32 %v438, %v441
        %v443 = vmul.f32 %v442, 1.442695
        %v444 = vpow.pop %v443
        %v445 = vsel %vm347, %v444, 0.0
        %446 = vadd.xlane.f32.xlu0 %v445
        %v447 = vpop.xlane.xlu0 %446
        %v448 = vrcp.pop %v447
        %v449 = vmul.f32 %v444, %v448
        %450 = vrot.lane.b32.xlu0 %v342, 56
        %v451 = vpop.permute.xlu0 %450
        %v454 = vsel %vm347, %v449, 0
        %456 = vmatpush.msra.mxu0 0.0
        %457 = vmatpush.msra.mxu0 0.0
        %458 = vmatpush.msra.mxu0 0.0
        %459 = vmatpush.msra.mxu0 0.0
        %460 = vmatpush.msra.mxu0 0.0
        %461 = vmatpush.msra.mxu0 0.0
        %462 = vmatpush.msra.mxu0 0.0
        %463 = vmatpush.msra.mxu0 0.0
        %464 = vmatpush.msra.mxu0 0.0
        %465 = vmatpush.msra.mxu0 0.0
        %466 = vmatpush.msra.mxu0 0.0
        %467 = vmatpush.msra.mxu0 0.0
        %468 = vmatpush.msra.mxu0 0.0
        %469 = vmatpush.msra.mxu0 0.0
        %470 = vmatpush.msra.mxu0 0.0
        %471 = vmatpush.msra.mxu0 %v451
        %472 = vmatmul.f32.gmra.mxu0 %v454
        %v473 = vpop.f32.mrf.mxu0
        %v474 = vadd.f32 0.0, %v473
        %475 = vdwg.mxu0
        %476 = vrot.lane.b32.xlu0 %v342, 112
        %v477 = vpop.permute.xlu0 %476
        %478 = vrot.lane.b32.xlu0 %v342, 80
        %v479 = vpop.permute.xlu0 %478
        %v480 = vsel %vm347, %v477, 0
        %v482 = vsel %vm347, %v479, 0
        %484 = vmatpush.xpose.msra.mxu0 0.0
        %485 = vmatpush.xpose.msra.mxu0 0.0
        %486 = vmatpush.xpose.msra.mxu0 0.0
        %487 = vmatpush.xpose.msra.mxu0 0.0
        %488 = vmatpush.xpose.msra.mxu0 0.0
        %489 = vmatpush.xpose.msra.mxu0 0.0
        %490 = vmatpush.xpose.msra.mxu0 0.0
        %491 = vmatpush.xpose.msra.mxu0 0.0
        %492 = vmatpush.xpose.msra.mxu0 0.0
        %493 = vmatpush.xpose.msra.mxu0 0.0
        %494 = vmatpush.xpose.msra.mxu0 0.0
        %495 = vmatpush.xpose.msra.mxu0 0.0
        %496 = vmatpush.xpose.msra.mxu0 0.0
        %497 = vmatpush.xpose.msra.mxu0 0.0
        %498 = vmatpush.xpose.msra.mxu0 0.0
        %499 = vmatpush.xpose.msra.mxu0 %v482
        %500 = vmatmul.f32.gmra.mxu0 %v480
        %v501 = vpop.f32.mrf.mxu0
        %v502 = vadd.f32 0.0, %v501
        %503 = vdwg.mxu0
        %v504 = vmul.f32 %v502, 0.35355338
        %v505 = vsel %vm347, %v504, -inf
        %506 = vmax.xlane.f32.xlu0 %v505
        %v507 = vpop.xlane.xlu0 %506
        %v508 = vsub.f32 %v504, %v507
        %v509 = vmul.f32 %v508, 1.442695
        %v510 = vpow.pop %v509
        %v511 = vsel %vm347, %v510, 0.0
        %512 = vadd.xlane.f32.xlu0 %v511
        %v513 = vpop.xlane.xlu0 %512
        %v514 = vrcp.pop %v513
        %v515 = vmul.f32 %v510, %v514
        %516 = vrot.lane.b32.xlu0 %v342, 48
        %v517 = vpop.permute.xlu0 %516
        %v520 = vsel %vm347, %v515, 0
        %522 = vmatpush.msra.mxu0 0.0
        %523 = vmatpush.msra.mxu0 0.0
        %524 = vmatpush.msra.mxu0 0.0
        %525 = vmatpush.msra.mxu0 0.0
        %526 = vmatpush.msra.mxu0 0.0
        %527 = vmatpush.msra.mxu0 0.0
        %528 = vmatpush.msra.mxu0 0.0
        %529 = vmatpush.msra.mxu0 0.0
        %530 = vmatpush.msra.mxu0 0.0
        %531 = vmatpush.msra.mxu0 0.0
        %532 = vmatpush.msra.mxu0 0.0
        %533 = vmatpush.msra.mxu0 0.0
        %534 = vmatpush.msra.mxu0 0.0
        %535 = vmatpush.msra.mxu0 0.0
        %536 = vmatpush.msra.mxu0 0.0
        %537 = vmatpush.msra.mxu0 %v517
        %538 = vmatmul.f32.gmra.mxu0 %v520
        %v539 = vpop.f32.mrf.mxu0
        %v540 = vadd.f32 0.0, %v539
        %541 = vdwg.mxu0
        %542 = vrot.lane.b32.xlu0 %v342, 104
        %v543 = vpop.permute.xlu0 %542
        %544 = vrot.lane.b32.xlu0 %v342, 72
        %v545 = vpop.permute.xlu0 %544
        %v546 = vsel %vm347, %v543, 0
        %v548 = vsel %vm347, %v545, 0
        %550 = vmatpush.xpose.msra.mxu0 0.0
        %551 = vmatpush.xpose.msra.mxu0 0.0
        %552 = vmatpush.xpose.msra.mxu0 0.0
        %553 = vmatpush.xpose.msra.mxu0 0.0
        %554 = vmatpush.xpose.msra.mxu0 0.0
        %555 = vmatpush.xpose.msra.mxu0 0.0
        %556 = vmatpush.xpose.msra.mxu0 0.0
        %557 = vmatpush.xpose.msra.mxu0 0.0
        %558 = vmatpush.xpose.msra.mxu0 0.0
        %559 = vmatpush.xpose.msra.mxu0 0.0
        %560 = vmatpush.xpose.msra.mxu0 0.0
        %561 = vmatpush.xpose.msra.mxu0 0.0
        %562 = vmatpush.xpose.msra.mxu0 0.0
        %563 = vmatpush.xpose.msra.mxu0 0.0
        %564 = vmatpush.xpose.msra.mxu0 0.0
        %565 = vmatpush.xpose.msra.mxu0 %v548
        %566 = vmatmul.f32.gmra.mxu0 %v546
        %v567 = vpop.f32.mrf.mxu0
        %v568 = vadd.f32 0.0, %v567
        %569 = vdwg.mxu0
        %v570 = vmul.f32 %v568, 0.35355338
        %v571 = vsel %vm347, %v570, -inf
        %572 = vmax.xlane.f32.xlu0 %v571
        %v573 = vpop.xlane.xlu0 %572
        %v574 = vsub.f32 %v570, %v573
        %v575 = vmul.f32 %v574, 1.442695
        %v576 = vpow.pop %v575
        %v577 = vsel %vm347, %v576, 0.0
        %578 = vadd.xlane.f32.xlu0 %v577
        %v579 = vpop.xlane.xlu0 %578
        %v580 = vrcp.pop %v579
        %v581 = vmul.f32 %v576, %v580
        %582 = vrot.lane.b32.xlu0 %v342, 40
        %v583 = vpop.permute.xlu0 %582
        %v586 = vsel %vm347, %v581, 0
        %588 = vmatpush.msra.mxu0 0.0
        %589 = vmatpush.msra.mxu0 0.0
        %590 = vmatpush.msra.mxu0 0.0
        %591 = vmatpush.msra.mxu0 0.0
        %592 = vmatpush.msra.mxu0 0.0
        %593 = vmatpush.msra.mxu0 0.0
        %594 = vmatpush.msra.mxu0 0.0
        %595 = vmatpush.msra.mxu0 0.0
        %596 = vmatpush.msra.mxu0 0.0
        %597 = vmatpush.msra.mxu0 0.0
        %598 = vmatpush.msra.mxu0 0.0
        %599 = vmatpush.msra.mxu0 0.0
        %600 = vmatpush.msra.mxu0 0.0
        %601 = vmatpush.msra.mxu0 0.0
        %602 = vmatpush.msra.mxu0 0.0
        %603 = vmatpush.msra.mxu0 %v583
        %604 = vmatmul.f32.gmra.mxu0 %v586
        %v605 = vpop.f32.mrf.mxu0
        %v606 = vadd.f32 0.0, %v605
        %607 = vdwg.mxu0
        %608 = vrot.lane.b32.xlu0 %v449, 8
        %v609 = vpop.permute.xlu0 %608
        %611 = vrot.lane.b32.xlu0 %v515, 16
        %v612 = vpop.permute.xlu0 %611
        %614 = vrot.lane.b32.xlu0 %v581, 24
        %v615 = vpop.permute.xlu0 %614
        %v617 = vsel %vm347, %v383, %v609
        %vm618 = vcmask 130048
        %v619 = vsel %vm618, %v617, %v612
        %vm620 = vcmask 195584
        %v621 = vsel %vm620, %v619, %v615
        %623 = vrot.lane.b32.xlu0 %v474, 8
        %v624 = vpop.permute.xlu0 %623
        %627 = vrot.lane.b32.xlu0 %v540, 16
        %v628 = vpop.permute.xlu0 %627
        %631 = vrot.lane.b32.xlu0 %v606, 24
        %v632 = vpop.permute.xlu0 %631
        %v634 = vsel %vm347, %v408, %v624
        %v635 = vsel %vm618, %v634, %v628
        %v636 = vsel %vm620, %v635, %v632
        %v637 = vld [vmem:[%s2] sm:$0xff]
        %v638 = vld [vmem:[%s2 + $0x8] sm:$0xff]
        %v639 = vld [vmem:[%s2 + $0x10] sm:$0xff]
        %v640 = vld [vmem:[%s2 + $0x18] sm:$0xff]
        %v641 = vperm.slane %v314, 1
        %v643 = vsel %vm320, %v636, 0
        %645 = vmatpush.msra.mxu0 0.0
        %646 = vmatpush.msra.mxu0 0.0
        %647 = vmatpush.msra.mxu0 0.0
        %648 = vmatpush.msra.mxu0 0.0
        %649 = vmatpush.msra.mxu0 0.0
        %650 = vmatpush.msra.mxu0 0.0
        %651 = vmatpush.msra.mxu0 0.0
        %652 = vmatpush.msra.mxu0 0.0
        %653 = vmatpush.msra.mxu0 0.0
        %654 = vmatpush.msra.mxu0 0.0
        %655 = vmatpush.msra.mxu0 0.0
        %656 = vmatpush.msra.mxu0 0.0
        %657 = vmatpush.msra.mxu0 %v640
        %658 = vmatpush.msra.mxu0 %v639
        %659 = vmatpush.msra.mxu0 %v638
        %660 = vmatpush.msra.mxu0 %v637
        %661 = vmatmul.f32.gmra.mxu0 %v643
        %v662 = vpop.f32.mrf.mxu0
        %v663 = vadd.f32 %v641, %v662
        %664 = vdwg.mxu0
        %v665 = vadd.f32 %v313, %v663
        %v666 = vsel %vm320, %v665, 0.0
        %667 = vadd.xlane.f32.xlu0 %v666
        %v668 = vpop.xlane.xlu0 %667
        %v669 = vrcp.pop 32.0
        %v670 = vmul.f32 32.0, %v669
        %v671 = vsub.f32 1.0, %v670
        %v672 = vmul.f32 %v669, %v671
        %v673 = vadd.f32 %v669, %v672
        %vm674 = vweird.f32 %v669
        %v675 = vsel %vm674, %v669, %v673
        %v676 = vmul.f32 %v668, %v675
        %v677 = vsub.f32 %v665, %v676
        %v678 = vmul.f32 %v677, %v677
        %v679 = vsel %vm320, %v678, 0.0
        %680 = vadd.xlane.f32.xlu0 %v679
        %v681 = vpop.xlane.xlu0 %680
        %v682 = vmul.f32 %v681, %v675
        %v683 = vadd.f32 %v682, 1e-05
        %v684 = vrsqrt.pop %v683
        %v685 = vmul.f32 %v684, %v683
        %v686 = vmul.f32 %v685, %v684
        %v687 = vmul.f32 0.5, %v686
        %v688 = vsub.f32 1.5, %v687
        %v689 = vmul.f32 %v684, %v688
        %vm690 = vweird.f32 %v683
        %vm691 = vweird.f32 %v684
        %vm692 = vmor %vm690, %vm691
        %v693 = vsel %vm692, %v684, %v689
        %v694 = vmul.f32 %v677, %v693
        %v695 = vperm.slane %v314, 4
        %v696 = vmul.f32 %v694, %v695
        %v697 = vperm.slane %v314, 5
        %v698 = vadd.f32 %v696, %v697
        %v699 = vld [vmem:[%s3] sm:$0xff]
        %v700 = vld [vmem:[%s3 + $0x8] sm:$0xff]
        %v701 = vld [vmem:[%s3 + $0x10] sm:$0xff]
        %v702 = vld [vmem:[%s3 + $0x18] sm:$0xff]
        %v703 = vperm.slane %v314, 2
        %v705 = vsel %vm320, %v698, 0
        %707 = vmatpush.msra.mxu0 0.0
        %708 = vmatpush.msra.mxu0 0.0
        %709 = vmatpush.msra.mxu0 0.0
        %710 = vmatpush.msra.mxu0 0.0
        %711 = vmatpush.msra.mxu0 0.0
        %712 = vmatpush.msra.mxu0 0.0
        %713 = vmatpush.msra.mxu0 0.0
        %714 = vmatpush.msra.mxu0 0.0
        %715 = vmatpush.msra.mxu0 0.0
        %716 = vmatpush.msra.mxu0 0.0
        %717 = vmatpush.msra.mxu0 0.0
        %718 = vmatpush.msra.mxu0 0.0
        %719 = vmatpush.msra.mxu0 %v702
        %720 = vmatpush.msra.mxu0 %v701
        %721 = vmatpush.msra.mxu0 %v700
        %722 = vmatpush.msra.mxu0 %v699
        %723 = vmatmul.f32.gmra.mxu0 %v705
        %v724 = vpop.f32.mrf.mxu0
        %v725 = vadd.f32 %v703, %v724
        %726 = vdwg.mxu0
        %v727 = vmax.f32 %v725, 0.0
        %v728 = vld [vmem:[%s4] sm:$0xff]
        %v729 = vld [vmem:[%s4 + $0x8] sm:$0xff]
        %v730 = vld [vmem:[%s4 + $0x10] sm:$0xff]
        %v731 = vld [vmem:[%s4 + $0x18] sm:$0xff]
        %v732 = vld [vmem:[%s4 + $0x20] sm:$0xff]
        %v733 = vld [vmem:[%s4 + $0x28] sm:$0xff]
        %v734 = vld [vmem:[%s4 + $0x30] sm:$0xff]
        %v735 = vld [vmem:[%s4 + $0x38] sm:$0xff]
        %v736 = vperm.slane %v314, 3
        %vm737 = vcmask 523264
        %v739 = vsel %vm737, %v727, 0
        %741 = vmatpush.msra.mxu0 0.0
        %742 = vmatpush.msra.mxu0 0.0
        %743 = vmatpush.msra.mxu0 0.0
        %744 = vmatpush.msra.mxu0 0.0
        %745 = vmatpush.msra.mxu0 0.0
        %746 = vmatpush.msra.mxu0 0.0
        %747 = vmatpush.msra.mxu0 0.0
        %748 = vmatpush.msra.mxu0 0.0
        %749 = vmatpush.msra.mxu0 %v735
        %750 = vmatpush.msra.mxu0 %v734
        %751 = vmatpush.msra.mxu0 %v733
        %752 = vmatpush.msra.mxu0 %v732
        %753 = vmatpush.msra.mxu0 %v731
        %754 = vmatpush.msra.mxu0 %v730
        %755 = vmatpush.msra.mxu0 %v729
        %756 = vmatpush.msra.mxu0 %v728
        %757 = vmatmul.f32.gmra.mxu0 %v739
        %v758 = vpop.f32.mrf.mxu0
        %v759 = vadd.f32 %v736, %v758
        %760 = vdwg.mxu0
        %v761 = vadd.f32 %v698, %v759
        %v762 = vsel %vm320, %v761, 0.0
        %763 = vadd.xlane.f32.xlu0 %v762
        %v764 = vpop.xlane.xlu0 %763
        %v765 = vmul.f32 %v764, %v675
        %v766 = vsub.f32 %v761, %v765
        %v767 = vmul.f32 %v766, %v766
        %v768 = vsel %vm320, %v767, 0.0
        %769 = vadd.xlane.f32.xlu0 %v768
        %v770 = vpop.xlane.xlu0 %769
        %v771 = vmul.f32 %v770, %v675
        %v772 = vadd.f32 %v771, 1e-05
        %v773 = vrsqrt.pop %v772
        %v774 = vmul.f32 %v773, %v772
        %v775 = vmul.f32 %v774, %v773
        %v776 = vmul.f32 0.5, %v775
        %v777 = vsub.f32 1.5, %v776
        %v778 = vmul.f32 %v773, %v777
        %vm779 = vweird.f32 %v772
        %vm780 = vweird.f32 %v773
        %vm781 = vmor %vm779, %vm780
        %v782 = vsel %vm781, %v773, %v778
        %v783 = vmul.f32 %v766, %v782
        %v784 = vperm.slane %v314, 6
        %v785 = vmul.f32 %v783, %v784
        %v786 = vperm.slane %v314, 7
        %v787 = vadd.f32 %v785, %v786
        %s788 = scalar_lea.vmem [#allocation5], 8
        %v789 = vld [vmem:[%s788] sm:$0xff]
        %s790 = scalar_lea.vmem %s1, 32
        %v791 = vld [vmem:[%s790] sm:$0xff]
        %v792 = vld [vmem:[%s790 + $0x8] sm:$0xff]
        %v793 = vld [vmem:[%s790 + $0x10] sm:$0xff]
        %v794 = vld [vmem:[%s790 + $0x18] sm:$0xff]
        %v795 = vperm.slane %v789, 0
        %v797 = vsel %vm320, %v787, 0
        %799 = vmatpush.msra.mxu0 0.0
        %800 = vmatpush.msra.mxu0 0.0
        %801 = vmatpush.msra.mxu0 0.0
        %802 = vmatpush.msra.mxu0 0.0
        %803 = vmatpush.msra.mxu0 0.0
        %804 = vmatpush.msra.mxu0 0.0
        %805 = vmatpush.msra.mxu0 0.0
        %806 = vmatpush.msra.mxu0 0.0
        %807 = vmatpush.msra.mxu0 0.0
        %808 = vmatpush.msra.mxu0 0.0
        %809 = vmatpush.msra.mxu0 0.0
        %810 = vmatpush.msra.mxu0 0.0
        %811 = vmatpush.msra.mxu0 %v794
        %812 = vmatpush.msra.mxu0 %v793
        %813 = vmatpush.msra.mxu0 %v792
        %814 = vmatpush.msra.mxu0 %v791
        %815 = vmatmul.f32.gmra.mxu0 %v797
        %v816 = vpop.f32.mrf.mxu0
        %v817 = vadd.f32 %v795, %v816
        %818 = vdwg.mxu0
        %820 = vrot.lane.b32.xlu0 %v817, 96
        %v821 = vpop.permute.xlu0 %820
        %v822 = vsel %vm347, %v817, 0
        %v824 = vsel %vm347, %v821, 0
        %826 = vmatpush.xpose.msra.mxu0 0.0
        %827 = vmatpush.xpose.msra.mxu0 0.0
        %828 = vmatpush.xpose.msra.mxu0 0.0
        %829 = vmatpush.xpose.msra.mxu0 0.0
        %830 = vmatpush.xpose.msra.mxu0 0.0
        %831 = vmatpush.xpose.msra.mxu0 0.0
        %832 = vmatpush.xpose.msra.mxu0 0.0
        %833 = vmatpush.xpose.msra.mxu0 0.0
        %834 = vmatpush.xpose.msra.mxu0 0.0
        %835 = vmatpush.xpose.msra.mxu0 0.0
        %836 = vmatpush.xpose.msra.mxu0 0.0
        %837 = vmatpush.xpose.msra.mxu0 0.0
        %838 = vmatpush.xpose.msra.mxu0 0.0
        %839 = vmatpush.xpose.msra.mxu0 0.0
        %840 = vmatpush.xpose.msra.mxu0 0.0
        %841 = vmatpush.xpose.msra.mxu0 %v824
        %842 = vmatmul.f32.gmra.mxu0 %v822
        %v843 = vpop.f32.mrf.mxu0
        %v844 = vadd.f32 0.0, %v843
        %845 = vdwg.mxu0
        %v846 = vmul.f32 %v844, 0.35355338
        %v847 = vsel %vm347, %v846, -inf
        %848 = vmax.xlane.f32.xlu0 %v847
        %v849 = vpop.xlane.xlu0 %848
        %v850 = vsub.f32 %v846, %v849
        %v851 = vmul.f32 %v850, 1.442695
        %v852 = vpow.pop %v851
        %v853 = vsel %vm347, %v852, 0.0
        %854 = vadd.xlane.f32.xlu0 %v853
        %v855 = vpop.xlane.xlu0 %854
        %v856 = vrcp.pop %v855
        %v857 = vmul.f32 %v852, %v856
        %858 = vrot.lane.b32.xlu0 %v817, 64
        %v859 = vpop.permute.xlu0 %858
        %v862 = vsel %vm347, %v857, 0
        %864 = vmatpush.msra.mxu0 0.0
        %865 = vmatpush.msra.mxu0 0.0
        %866 = vmatpush.msra.mxu0 0.0
        %867 = vmatpush.msra.mxu0 0.0
        %868 = vmatpush.msra.mxu0 0.0
        %869 = vmatpush.msra.mxu0 0.0
        %870 = vmatpush.msra.mxu0 0.0
        %871 = vmatpush.msra.mxu0 0.0
        %872 = vmatpush.msra.mxu0 0.0
        %873 = vmatpush.msra.mxu0 0.0
        %874 = vmatpush.msra.mxu0 0.0
        %875 = vmatpush.msra.mxu0 0.0
        %876 = vmatpush.msra.mxu0 0.0
        %877 = vmatpush.msra.mxu0 0.0
        %878 = vmatpush.msra.mxu0 0.0
        %879 = vmatpush.msra.mxu0 %v859
        %880 = vmatmul.f32.gmra.mxu0 %v862
        %v881 = vpop.f32.mrf.mxu0
        %v882 = vadd.f32 0.0, %v881
        %883 = vdwg.mxu0
        %884 = vrot.lane.b32.xlu0 %v817, 120
        %v885 = vpop.permute.xlu0 %884
        %886 = vrot.lane.b32.xlu0 %v817, 88
        %v887 = vpop.permute.xlu0 %886
        %v888 = vsel %vm347, %v885, 0
        %v890 = vsel %vm347, %v887, 0
        %892 = vmatpush.xpose.msra.mxu0 0.0
        %893 = vmatpush.xpose.msra.mxu0 0.0
        %894 = vmatpush.xpose.msra.mxu0 0.0
        %895 = vmatpush.xpose.msra.mxu0 0.0
        %896 = vmatpush.xpose.msra.mxu0 0.0
        %897 = vmatpush.xpose.msra.mxu0 0.0
        %898 = vmatpush.xpose.msra.mxu0 0.0
        %899 = vmatpush.xpose.msra.mxu0 0.0
        %900 = vmatpush.xpose.msra.mxu0 0.0
        %901 = vmatpush.xpose.msra.mxu0 0.0
        %902 = vmatpush.xpose.msra.mxu0 0.0
        %903 = vmatpush.xpose.msra.mxu0 0.0
        %904 = vmatpush.xpose.msra.mxu0 0.0
        %905 = vmatpush.xpose.msra.mxu0 0.0
        %906 = vmatpush.xpose.msra.mxu0 0.0
        %907 = vmatpush.xpose.msra.mxu0 %v890
        %908 = vmatmul.f32.gmra.mxu0 %v888
        %v909 = vpop.f32.mrf.mxu0
        %v910 = vadd.f32 0.0, %v909
        %911 = vdwg.mxu0
        %v912 = vmul.f32 %v910, 0.35355338
        %v913 = vsel %vm347, %v912, -inf
        %914 = vmax.xlane.f32.xlu0 %v913
        %v915 = vpop.xlane.xlu0 %914
        %v916 = vsub.f32 %v912, %v915
        %v917 = vmul.f32 %v916, 1.442695
        %v918 = vpow.pop %v917
        %v919 = vsel %vm347, %v918, 0.0
        %920 = vadd.xlane.f32.xlu0 %v919
        %v921 = vpop.xlane.xlu0 %920
        %v922 = vrcp.pop %v921
        %v923 = vmul.f32 %v918, %v922
        %924 = vrot.lane.b32.xlu0 %v817, 56
        %v925 = vpop.permute.xlu0 %924
        %v928 = vsel %vm347, %v923, 0
        %930 = vmatpush.msra.mxu0 0.0
        %931 = vmatpush.msra.mxu0 0.0
        %932 = vmatpush.msra.mxu0 0.0
        %933 = vmatpush.msra.mxu0 0.0
        %934 = vmatpush.msra.mxu0 0.0
        %935 = vmatpush.msra.mxu0 0.0
        %936 = vmatpush.msra.mxu0 0.0
        %937 = vmatpush.msra.mxu0 0.0
        %938 = vmatpush.msra.mxu0 0.0
        %939 = vmatpush.msra.mxu0 0.0
        %940 = vmatpush.msra.mxu0 0.0
        %941 = vmatpush.msra.mxu0 0.0
        %942 = vmatpush.msra.mxu0 0.0
        %943 = vmatpush.msra.mxu0 0.0
        %944 = vmatpush.msra.mxu0 0.0
        %945 = vmatpush.msra.mxu0 %v925
        %946 = vmatmul.f32.gmra.mxu0 %v928
        %v947 = vpop.f32.mrf.mxu0
        %v948 = vadd.f32 0.0, %v947
        %949 = vdwg.mxu0
        %950 = vrot.lane.b32.xlu0 %v817, 112
        %v951 = vpop.permute.xlu0 %950
        %952 = vrot.lane.b32.xlu0 %v817, 80
        %v953 = vpop.permute.xlu0 %952
        %v954 = vsel %vm347, %v951, 0
        %v956 = vsel %vm347, %v953, 0
        %958 = vmatpush.xpose.msra.mxu0 0.0
        %959 = vmatpush.xpose.msra.mxu0 0.0
        %960 = vmatpush.xpose.msra.mxu0 0.0
        %961 = vmatpush.xpose.msra.mxu0 0.0
        %962 = vmatpush.xpose.msra.mxu0 0.0
        %963 = vmatpush.xpose.msra.mxu0 0.0
        %964 = vmatpush.xpose.msra.mxu0 0.0
        %965 = vmatpush.xpose.msra.mxu0 0.0
        %966 = vmatpush.xpose.msra.mxu0 0.0
        %967 = vmatpush.xpose.msra.mxu0 0.0
        %968 = vmatpush.xpose.msra.mxu0 0.0
        %969 = vmatpush.xpose.msra.mxu0 0.0
        %970 = vmatpush.xpose.msra.mxu0 0.0
        %971 = vmatpush.xpose.msra.mxu0 0.0
        %972 = vmatpush.xpose.msra.mxu0 0.0
        %973 = vmatpush.xpose.msra.mxu0 %v956
        %974 = vmatmul.f32.gmra.mxu0 %v954
        %v975 = vpop.f32.mrf.mxu0
        %v976 = vadd.f32 0.0, %v975
        %977 = vdwg.mxu0
        %v978 = vmul.f32 %v976, 0.35355338
        %v979 = vsel %vm347, %v978, -inf
        %980 = vmax.xlane.f32.xlu0 %v979
        %v981 = vpop.xlane.xlu0 %980
        %v982 = vsub.f32 %v978, %v981
        %v983 = vmul.f32 %v982, 1.442695
        %v984 = vpow.pop %v983
        %v985 = vsel %vm347, %v984, 0.0
        %986 = vadd.xlane.f32.xlu0 %v985
        %v987 = vpop.xlane.xlu0 %986
        %v988 = vrcp.pop %v987
        %v989 = vmul.f32 %v984, %v988
        %990 = vrot.lane.b32.xlu0 %v817, 48
        %v991 = vpop.permute.xlu0 %990
        %v994 = vsel %vm347, %v989, 0
        %996 = vmatpush.msra.mxu0 0.0
        %997 = vmatpush.msra.mxu0 0.0
        %998 = vmatpush.msra.mxu0 0.0
        %999 = vmatpush.msra.mxu0 0.0
        %1000 = vmatpush.msra.mxu0 0.0
        %1001 = vmatpush.msra.mxu0 0.0
        %1002 = vmatpush.msra.mxu0 0.0
        %1003 = vmatpush.msra.mxu0 0.0
        %1004 = vmatpush.msra.mxu0 0.0
        %1005 = vmatpush.msra.mxu0 0.0
        %1006 = vmatpush.msra.mxu0 0.0
        %1007 = vmatpush.msra.mxu0 0.0
        %1008 = vmatpush.msra.mxu0 0.0
        %1009 = vmatpush.msra.mxu0 0.0
        %1010 = vmatpush.msra.mxu0 0.0
        %1011 = vmatpush.msra.mxu0 %v991
        %1012 = vmatmul.f32.gmra.mxu0 %v994
        %v1013 = vpop.f32.mrf.mxu0
        %v1014 = vadd.f32 0.0, %v1013
        %1015 = vdwg.mxu0
        %1016 = vrot.lane.b32.xlu0 %v817, 104
        %v1017 = vpop.permute.xlu0 %1016
        %1018 = vrot.lane.b32.xlu0 %v817, 72
        %v1019 = vpop.permute.xlu0 %1018
        %v1020 = vsel %vm347, %v1017, 0
        %v1022 = vsel %vm347, %v1019, 0
        %1024 = vmatpush.xpose.msra.mxu0 0.0
        %1025 = vmatpush.xpose.msra.mxu0 0.0
        %1026 = vmatpush.xpose.msra.mxu0 0.0
        %1027 = vmatpush.xpose.msra.mxu0 0.0
        %1028 = vmatpush.xpose.msra.mxu0 0.0
        %1029 = vmatpush.xpose.msra.mxu0 0.0
        %1030 = vmatpush.xpose.msra.mxu0 0.0
        %1031 = vmatpush.xpose.msra.mxu0 0.0
        %1032 = vmatpush.xpose.msra.mxu0 0.0
        %1033 = vmatpush.xpose.msra.mxu0 0.0
        %1034 = vmatpush.xpose.msra.mxu0 0.0
        %1035 = vmatpush.xpose.msra.mxu0 0.0
        %1036 = vmatpush.xpose.msra.mxu0 0.0
        %1037 = vmatpush.xpose.msra.mxu0 0.0
        %1038 = vmatpush.xpose.msra.mxu0 0.0
        %1039 = vmatpush.xpose.msra.mxu0 %v1022
        %1040 = vmatmul.f32.gmra.mxu0 %v1020
        %v1041 = vpop.f32.mrf.mxu0
        %v1042 = vadd.f32 0.0, %v1041
        %1043 = vdwg.mxu0
        %v1044 = vmul.f32 %v1042, 0.35355338
        %v1045 = vsel %vm347, %v1044, -inf
        %1046 = vmax.xlane.f32.xlu0 %v1045
        %v1047 = vpop.xlane.xlu0 %1046
        %v1048 = vsub.f32 %v1044, %v1047
        %v1049 = vmul.f32 %v1048, 1.442695
        %v1050 = vpow.pop %v1049
        %v1051 = vsel %vm347, %v1050, 0.0
        %1052 = vadd.xlane.f32.xlu0 %v1051
        %v1053 = vpop.xlane.xlu0 %1052
        %v1054 = vrcp.pop %v1053
        %v1055 = vmul.f32 %v1050, %v1054
        %1056 = vrot.lane.b32.xlu0 %v817, 40
        %v1057 = vpop.permute.xlu0 %1056
        %v1060 = vsel %vm347, %v1055, 0
        %1062 = vmatpush.msra.mxu0 0.0
        %1063 = vmatpush.msra.mxu0 0.0
        %1064 = vmatpush.msra.mxu0 0.0
        %1065 = vmatpush.msra.mxu0 0.0
        %1066 = vmatpush.msra.mxu0 0.0
        %1067 = vmatpush.msra.mxu0 0.0
        %1068 = vmatpush.msra.mxu0 0.0
        %1069 = vmatpush.msra.mxu0 0.0
        %1070 = vmatpush.msra.mxu0 0.0
        %1071 = vmatpush.msra.mxu0 0.0
        %1072 = vmatpush.msra.mxu0 0.0
        %1073 = vmatpush.msra.mxu0 0.0
        %1074 = vmatpush.msra.mxu0 0.0
        %1075 = vmatpush.msra.mxu0 0.0
        %1076 = vmatpush.msra.mxu0 0.0
        %1077 = vmatpush.msra.mxu0 %v1057
        %1078 = vmatmul.f32.gmra.mxu0 %v1060
        %v1079 = vpop.f32.mrf.mxu0
        %v1080 = vadd.f32 0.0, %v1079
        %1081 = vdwg.mxu0
        %1082 = vrot.lane.b32.xlu0 %v923, 8
        %v1083 = vpop.permute.xlu0 %1082
        %1085 = vrot.lane.b32.xlu0 %v989, 16
        %v1086 = vpop.permute.xlu0 %1085
        %1088 = vrot.lane.b32.xlu0 %v1055, 24
        %v1089 = vpop.permute.xlu0 %1088
        %v1091 = vsel %vm347, %v857, %v1083
        %v1092 = vsel %vm618, %v1091, %v1086
        %v1093 = vsel %vm620, %v1092, %v1089
        %1095 = vrot.lane.b32.xlu0 %v948, 8
        %v1096 = vpop.permute.xlu0 %1095
        %1099 = vrot.lane.b32.xlu0 %v1014, 16
        %v1100 = vpop.permute.xlu0 %1099
        %1103 = vrot.lane.b32.xlu0 %v1080, 24
        %v1104 = vpop.permute.xlu0 %1103
        %v1106 = vsel %vm347, %v882, %v1096
        %v1107 = vsel %vm618, %v1106, %v1100
        %v1108 = vsel %vm620, %v1107, %v1104
        %s1109 = scalar_lea.vmem %s2, 32
        %v1110 = vld [vmem:[%s1109] sm:$0xff]
        %v1111 = vld [vmem:[%s1109 + $0x8] sm:$0xff]
        %v1112 = vld [vmem:[%s1109 + $0x10] sm:$0xff]
        %v1113 = vld [vmem:[%s1109 + $0x18] sm:$0xff]
        %v1114 = vperm.slane %v789, 1
        %v1116 = vsel %vm320, %v1108, 0
        %1118 = vmatpush.msra.mxu0 0.0
        %1119 = vmatpush.msra.mxu0 0.0
        %1120 = vmatpush.msra.mxu0 0.0
        %1121 = vmatpush.msra.mxu0 0.0
        %1122 = vmatpush.msra.mxu0 0.0
        %1123 = vmatpush.msra.mxu0 0.0
        %1124 = vmatpush.msra.mxu0 0.0
        %1125 = vmatpush.msra.mxu0 0.0
        %1126 = vmatpush.msra.mxu0 0.0
        %1127 = vmatpush.msra.mxu0 0.0
        %1128 = vmatpush.msra.mxu0 0.0
        %1129 = vmatpush.msra.mxu0 0.0
        %1130 = vmatpush.msra.mxu0 %v1113
        %1131 = vmatpush.msra.mxu0 %v1112
        %1132 = vmatpush.msra.mxu0 %v1111
        %1133 = vmatpush.msra.mxu0 %v1110
        %1134 = vmatmul.f32.gmra.mxu0 %v1116
        %v1135 = vpop.f32.mrf.mxu0
        %v1136 = vadd.f32 %v1114, %v1135
        %1137 = vdwg.mxu0
        %v1138 = vadd.f32 %v787, %v1136
        %v1139 = vsel %vm320, %v1138, 0.0
        %1140 = vadd.xlane.f32.xlu0 %v1139
        %v1141 = vpop.xlane.xlu0 %1140
        %v1142 = vmul.f32 %v1141, %v675
        %v1143 = vsub.f32 %v1138, %v1142
        %v1144 = vmul.f32 %v1143, %v1143
        %v1145 = vsel %vm320, %v1144, 0.0
        %1146 = vadd.xlane.f32.xlu0 %v1145
        %v1147 = vpop.xlane.xlu0 %1146
        %v1148 = vmul.f32 %v1147, %v675
        %v1149 = vadd.f32 %v1148, 1e-05
        %v1150 = vrsqrt.pop %v1149
        %v1151 = vmul.f32 %v1150, %v1149
        %v1152 = vmul.f32 %v1151, %v1150
        %v1153 = vmul.f32 0.5, %v1152
        %v1154 = vsub.f32 1.5, %v1153
        %v1155 = vmul.f32 %v1150, %v1154
        %vm1156 = vweird.f32 %v1149
        %vm1157 = vweird.f32 %v1150
        %vm1158 = vmor %vm1156, %vm1157
        %v1159 = vsel %vm1158, %v1150, %v1155
        %v1160 = vmul.f32 %v1143, %v1159
        %v1161 = vperm.slane %v789, 4
        %v1162 = vmul.f32 %v1160, %v1161
        %v1163 = vperm.slane %v789, 5
        %v1164 = vadd.f32 %v1162, %v1163
        %s1165 = scalar_lea.vmem %s3, 32
        %v1166 = vld [vmem:[%s1165] sm:$0xff]
        %v1167 = vld [vmem:[%s1165 + $0x8] sm:$0xff]
        %v1168 = vld [vmem:[%s1165 + $0x10] sm:$0xff]
        %v1169 = vld [vmem:[%s1165 + $0x18] sm:$0xff]
        %v1170 = vperm.slane %v789, 2
        %v1172 = vsel %vm320, %v1164, 0
        %1174 = vmatpush.msra.mxu0 0.0
        %1175 = vmatpush.msra.mxu0 0.0
        %1176 = vmatpush.msra.mxu0 0.0
        %1177 = vmatpush.msra.mxu0 0.0
        %1178 = vmatpush.msra.mxu0 0.0
        %1179 = vmatpush.msra.mxu0 0.0
        %1180 = vmatpush.msra.mxu0 0.0
        %1181 = vmatpush.msra.mxu0 0.0
        %1182 = vmatpush.msra.mxu0 0.0
        %1183 = vmatpush.msra.mxu0 0.0
        %1184 = vmatpush.msra.mxu0 0.0
        %1185 = vmatpush.msra.mxu0 0.0
        %1186 = vmatpush.msra.mxu0 %v1169
        %1187 = vmatpush.msra.mxu0 %v1168
        %1188 = vmatpush.msra.mxu0 %v1167
        %1189 = vmatpush.msra.mxu0 %v1166
        %1190 = vmatmul.f32.gmra.mxu0 %v1172
        %v1191 = vpop.f32.mrf.mxu0
        %v1192 = vadd.f32 %v1170, %v1191
        %1193 = vdwg.mxu0
        %v1194 = vmax.f32 %v1192, 0.0
        %s1195 = scalar_lea.vmem %s4, 64
        %v1196 = vld [vmem:[%s1195] sm:$0xff]
        %v1197 = vld [vmem:[%s1195 + $0x8] sm:$0xff]
        %v1198 = vld [vmem:[%s1195 + $0x10] sm:$0xff]
        %v1199 = vld [vmem:[%s1195 + $0x18] sm:$0xff]
        %v1200 = vld [vmem:[%s1195 + $0x20] sm:$0xff]
        %v1201 = vld [vmem:[%s1195 + $0x28] sm:$0xff]
        %v1202 = vld [vmem:[%s1195 + $0x30] sm:$0xff]
        %v1203 = vld [vmem:[%s1195 + $0x38] sm:$0xff]
        %v1204 = vperm.slane %v789, 3
        %v1206 = vsel %vm737, %v1194, 0
        %1208 = vmatpush.msra.mxu0 0.0
        %1209 = vmatpush.msra.mxu0 0.0
        %1210 = vmatpush.msra.mxu0 0.0
        %1211 = vmatpush.msra.mxu0 0.0
        %1212 = vmatpush.msra.mxu0 0.0
        %1213 = vmatpush.msra.mxu0 0.0
        %1214 = vmatpush.msra.mxu0 0.0
        %1215 = vmatpush.msra.mxu0 0.0
        %1216 = vmatpush.msra.mxu0 %v1203
        %1217 = vmatpush.msra.mxu0 %v1202
        %1218 = vmatpush.msra.mxu0 %v1201
        %1219 = vmatpush.msra.mxu0 %v1200
        %1220 = vmatpush.msra.mxu0 %v1199
        %1221 = vmatpush.msra.mxu0 %v1198
        %1222 = vmatpush.msra.mxu0 %v1197
        %1223 = vmatpush.msra.mxu0 %v1196
        %1224 = vmatmul.f32.gmra.mxu0 %v1206
        %v1225 = vpop.f32.mrf.mxu0
        %v1226 = vadd.f32 %v1204, %v1225
        %1227 = vdwg.mxu0
        %v1228 = vadd.f32 %v1164, %v1226
        %v1229 = vsel %vm320, %v1228, 0.0
        %1230 = vadd.xlane.f32.xlu0 %v1229
        %v1231 = vpop.xlane.xlu0 %1230
        %v1232 = vmul.f32 %v1231, %v675
        %v1233 = vsub.f32 %v1228, %v1232
        %v1234 = vmul.f32 %v1233, %v1233
        %v1235 = vsel %vm320, %v1234, 0.0
        %1236 = vadd.xlane.f32.xlu0 %v1235
        %v1237 = vpop.xlane.xlu0 %1236
        %v1238 = vmul.f32 %v1237, %v675
        %v1239 = vadd.f32 %v1238, 1e-05
        %v1240 = vrsqrt.pop %v1239
        %v1241 = vmul.f32 %v1240, %v1239
        %v1242 = vmul.f32 %v1241, %v1240
        %v1243 = vmul.f32 0.5, %v1242
        %v1244 = vsub.f32 1.5, %v1243
        %v1245 = vmul.f32 %v1240, %v1244
        %vm1246 = vweird.f32 %v1239
        %vm1247 = vweird.f32 %v1240
        %vm1248 = vmor %vm1246, %vm1247
        %v1249 = vsel %vm1248, %v1240, %v1245
        %v1250 = vmul.f32 %v1233, %v1249
        %v1251 = vperm.slane %v789, 6
        %v1252 = vmul.f32 %v1250, %v1251
        %v1253 = vperm.slane %v789, 7
        %v1254 = vadd.f32 %v1252, %v1253
        %v1255 = vld [vmem:[%s6] sm:$0x3]
        %v1256 = vsel %vm320, %v1254, 0.0
        %1257 = vadd.xlane.f32.xlu0 %v1256
        %v1258 = vpop.xlane.xlu0 %1257
        %v1259 = vmul.f32 %v1258, %v675
        %v1260 = vsub.f32 %v1254, %v1259
        %v1261 = vmul.f32 %v1260, %v1260
        %v1262 = vsel %vm320, %v1261, 0.0
        %1263 = vadd.xlane.f32.xlu0 %v1262
        %v1264 = vpop.xlane.xlu0 %1263
        %v1265 = vmul.f32 %v1264, %v675
        %v1266 = vadd.f32 %v1265, 1e-05
        %v1267 = vrsqrt.pop %v1266
        %v1268 = vmul.f32 %v1267, %v1266
        %v1269 = vmul.f32 %v1268, %v1267
        %v1270 = vmul.f32 0.5, %v1269
        %v1271 = vsub.f32 1.5, %v1270
        %v1272 = vmul.f32 %v1267, %v1271
        %vm1273 = vweird.f32 %v1266
        %vm1274 = vweird.f32 %v1267
        %vm1275 = vmor %vm1273, %vm1274
        %v1276 = vsel %vm1275, %v1267, %v1272
        %v1277 = vmul.f32 %v1260, %v1276
        %v1278 = vperm.slane %v1255, 0
        %v1279 = vmul.f32 %v1277, %v1278
        %v1280 = vperm.slane %v1255, 1
        %v1281 = vadd.f32 %v1279, %v1280
        %1283 = vrot.lane.b32.xlu0 %v1093, 32
        %v1284 = vpop.permute.xlu0 %1283
        %1287 = vrot.lane.b32.xlu0 %v1281, 64
        %v1288 = vpop.permute.xlu0 %1287
        %v1290 = vsel %vm320, %v621, %v1284
        %v1291 = vsel %vm737, %v1290, %v1288
        %vm1292 = vcmask 785408
        %v1293 = vsel %vm1292, %v1291, 0.0
        %1294 = vst [vmem:[%s312] sm:$0xff] %v1293
        %s1295 = sand.u32 %s185, 1
        %s1296 = scalar_lea.sflag [#allocation4], %s1295
        %s1297 = sand.u32 %s185, 1
        %s1298 = smul.addr %s1297, 8
        %s1299 = scalar_lea.vmem [#allocation7], %s1298
        // Predicated region
        $region57: #{tpu_custom_call.1} parent=47 // pred_check
          %p1300 = pneg %p195
        $region58: #{tpu_custom_call.1} parent=47 // pred_check_branch
          %1302 = sbr.rel (%p1300) target = $region60
        $region59: #{tpu_custom_call.1} parent=47 // pred_region
          %1304 = vsyncadd %s1296, 0
          %s1305 = smul.addr %s25, 8
          %s1306 = scalar_lea.hbm %s7, %s1305
          %s1308 = sshll.u32 %s1299, 4
          %s1309 = int_to_ptr.vmem [resolvable:$true] %s1308
          %s1310 = sshll.u32 %s1306, 4
          %s1311 = int_to_ptr.hbm [resolvable:$true] %s1310
          %1313 = dma.vmem_to_hbm [thread:$0]  %s1309, 128, %s1311, %s1296
        $region60: #{tpu_custom_call.1} parent=47 // pred_fallthru
          _
      $region48: #{tpu_custom_call.1} parent=5 // pred_fallthru
        _
      %p1314 = scmp.le.s32.totalorder 2, %s20
      // Predicated region
      $region61: #{tpu_custom_call.1} parent=5 // pred_check
        %p1315 = pneg %p1314
      $region62: #{tpu_custom_call.1} parent=5 // pred_check_branch
        %1317 = sbr.rel (%p1315) target = $region64
      $region63: #{tpu_custom_call.1} parent=5 // pred_region
        %s1318 = ssub.s32 %s20, 2
        // Predicated region
        $region65: #{tpu_custom_call.1} parent=63 // pred_check
          %p1319 = pneg %p201
        $region66: #{tpu_custom_call.1} parent=63 // pred_check_branch
          %1321 = sbr.rel (%p1319) target = $region68
        $region67: #{tpu_custom_call.1} parent=63 // pred_region
          %s1322 = sand.u32 %s186, 1
          %s1323 = scalar_lea.sflag [#allocation4], %s1322
          %s1324 = sand.u32 %s186, 1
          %s1325 = smul.addr %s1324, 8
          %s1326 = scalar_lea.vmem [#allocation7], %s1325
          %1328 = dma.done %s1323, 128
        $region68: #{tpu_custom_call.1} parent=63 // pred_fallthru
          _
      $region64: #{tpu_custom_call.1} parent=5 // pred_fallthru
        _
    $region6: #{tpu_custom_call.1} parent=1 // loop_footer
      %s24 = sadd.s32 1, %s20
    $region7: #{tpu_custom_call.1} parent=1 // loop_footer_branch
      %19 = sbr.rel target = $region3
    $region8: #{tpu_custom_call.1} parent=1 // loop_exit
      _
    %1329 = vsyncpa [#allocation3], 1
    %s1330 = scalar_lea.sflag [#allocation3], 1
    %1331 = vsyncpa %s1330, 1
    %1332 = vsyncpa [#allocation6], 1
    %1333 = vsyncpa [#allocation4], 1
    %s1334 = scalar_lea.sflag [#allocation4], 1
    %1335 = vsyncpa %s1334, 1

</llo_original>
